<compile_context>
chip_gen: v7x
topology: tpu7x:2x2x1
jax: 0.10.0
libtpu: 0.0.40
codegen_flags: <defaults>
</compile_context>

<pallas_src>
import functools
import math

import jax
import jax.numpy as jnp
from jax import lax
from jax.experimental import pallas as pl
from jax.experimental.pallas import tpu as pltpu

# ----------------------------- configuration -----------------------------
CFG = dict(
    vocab=64,          # synthetic vocab (real BERT: 30522)
    max_pos=16,        # synthetic max positions (real BERT: 512)
    type_vocab=2,
    hidden=32,         # real BERT: 768
    heads=4,           # real BERT: 12
    intermediate=64,   # real BERT: 3072
    layers=2,          # real BERT: 12
    eps=1e-12,
)
BATCH, SEQ = 2, 8


# ----------------------------- fused model kernel -----------------------------
def _bert_kernel(x_ref, mask_ref, embg_ref, embb_ref,
                 wqkv_ref, bqkv_ref, wo_ref, bo_ref,
                 ln1g_ref, ln1b_ref, w1_ref, b1_ref, w2_ref, b2_ref,
                 ln2g_ref, ln2b_ref,
                 o_ref,
                 x_sc, ctx_sc,
                 *, num_heads, scale, eps):
    """Grid = (batch, layer). One grid step = one encoder layer of one batch element.

    x_sc (VMEM, f32) carries the activation across the layer axis; at l == 0 it is
    seeded from the embedding sum + embedding LayerNorm, at l == L-1 the result is
    written to the output block.
    """
    l = pl.program_id(1)
    n_layers = pl.num_programs(1)

    def layer_norm(h, g, b):
        mu = jnp.mean(h, axis=-1, keepdims=True)
        var = jnp.mean(jnp.square(h - mu), axis=-1, keepdims=True)
        return (h - mu) * lax.rsqrt(var + eps) * g + b

    # ---- layer 0: fold in the embedding LayerNorm, seed the resident activation ----
    @pl.when(l == 0)
    def _():
        x_sc[...] = layer_norm(x_ref[0].astype(jnp.float32),
                               embg_ref[...], embb_ref[...])

    x = x_sc[...]                                   # (S, H) f32, resident across layers
    S, H = x.shape
    dh = H // num_heads
    mask = mask_ref[0].astype(jnp.float32)          # (1, S) additive padding mask

    # ---- fused Q/K/V projection: one bf16 MXU matmul, f32 accumulate ----
    qkv = jnp.dot(x.astype(jnp.bfloat16), wqkv_ref[0],
                  preferred_element_type=jnp.float32) + bqkv_ref[0]     # (S, 3H)

    # ---- multi-head self-attention: per-head softmax, context written into a
    #      contiguous (S, H) scratch, then ONE bf16 (S,H)@(H,H) output projection ----
    for h in range(num_heads):
        qh = qkv[:, h * dh:(h + 1) * dh].astype(jnp.bfloat16)           # (S, dH)
        kh = qkv[:, H + h * dh:H + (h + 1) * dh].astype(jnp.bfloat16)   # (S, dH)
        vh = qkv[:, 2 * H + h * dh:2 * H + (h + 1) * dh].astype(jnp.bfloat16)

        # contract last axes directly (no kh.T / materialized transpose)
        s = lax.dot_general(qh, kh, (((1,), (1,)), ((), ())),
                            preferred_element_type=jnp.float32) * scale  # (S, S)
        s = s + mask
        s = s - jnp.max(s, axis=-1, keepdims=True)
        p = jnp.exp(s)
        p = p * pl.reciprocal(jnp.sum(p, axis=-1, keepdims=True), approx=True)

        ctx_sc[:, h * dh:(h + 1) * dh] = jnp.dot(
            p.astype(jnp.bfloat16), vh, preferred_element_type=jnp.float32)

    attn = jnp.dot(ctx_sc[...].astype(jnp.bfloat16), wo_ref[0],
                   preferred_element_type=jnp.float32) + bo_ref[0]       # (S, H)

    # ---- residual + LayerNorm 1 (f32) ----
    h1 = layer_norm(attn + x, ln1g_ref[0], ln1b_ref[0])

    # ---- FFN: w1 + GELU + w2 (bf16 MXU operands, f32 accumulate) ----
    ff = jnp.dot(h1.astype(jnp.bfloat16), w1_ref[0],
                 preferred_element_type=jnp.float32) + b1_ref[0]
    # TODO(synk): HF BERT uses exact (erf) GELU; tanh approximation used here.
    ff = jax.nn.gelu(ff, approximate=True)
    ff = jnp.dot(ff.astype(jnp.bfloat16), w2_ref[0],
                 preferred_element_type=jnp.float32) + b2_ref[0]

    # ---- residual + LayerNorm 2 (f32); carry forward ----
    h2 = layer_norm(ff + h1, ln2g_ref[0], ln2b_ref[0])
    x_sc[...] = h2

    # ---- final layer: emit last_hidden_state ----
    @pl.when(l == n_layers - 1)
    def _():
        o_ref[0] = h2.astype(o_ref.dtype)


# ----------------------------- parameters -----------------------------
def init_params(key, cfg):
    H, I, L = cfg["hidden"], cfg["intermediate"], cfg["layers"]
    keys = iter(jax.random.split(key, 8))

    def w(shape, dtype=jnp.float32):
        return (0.02 * jax.random.normal(next(keys), shape, jnp.float32)).astype(dtype)

    # Per-layer weights stacked along a leading L axis so one pallas_call can walk
    # layers via a grid axis.  Matmul weights are bf16 (MXU fast path); biases / LN
    # params stay f32.
    return dict(
        word_emb=w((cfg["vocab"], H)),
        pos_emb=w((cfg["max_pos"], H)),
        type_emb=w((cfg["type_vocab"], H)),
        emb_ln_g=jnp.ones((1, H), jnp.float32),
        emb_ln_b=jnp.zeros((1, H), jnp.float32),
        layers=dict(
            wqkv=w((L, H, 3 * H), jnp.bfloat16),
            bqkv=jnp.zeros((L, 1, 3 * H), jnp.float32),
            wo=w((L, H, H), jnp.bfloat16),
            bo=jnp.zeros((L, 1, H), jnp.float32),
            ln1_g=jnp.ones((L, 1, H), jnp.float32),
            ln1_b=jnp.zeros((L, 1, H), jnp.float32),
            w1=w((L, H, I), jnp.bfloat16),
            b1=jnp.zeros((L, 1, I), jnp.float32),
            w2=w((L, I, H), jnp.bfloat16),
            b2=jnp.zeros((L, 1, H), jnp.float32),
            ln2_g=jnp.ones((L, 1, H), jnp.float32),
            ln2_b=jnp.zeros((L, 1, H), jnp.float32),
        ),
    )


# ----------------------------- model forward -----------------------------
def text_feature_extract(params, input_ids, attention_mask, cfg=CFG):
    """Returns last_hidden_state of shape [B, S, hidden] (matches the PyTorch module)."""
    B, S = input_ids.shape
    H, I, L, nH = cfg["hidden"], cfg["intermediate"], cfg["layers"], cfg["heads"]

    # Embedding table gathers stay in plain JAX (glue; no clean Pallas gather needed
    # at these sizes).  All token_type_ids are 0, as in the HF default.
    tok = params["word_emb"][input_ids]                       # [B, S, H]
    pos = params["pos_emb"][jnp.arange(S)][None, :, :]        # [1, S, H]
    typ = params["type_emb"][0][None, None, :]                # [1, 1, H]
    x = (tok + pos + typ).astype(jnp.float32)                 # [B, S, H]

    # BERT-style additive padding mask: (1 - mask) * -10000, shape [B, 1, S].
    mask_add = ((1.0 - attention_mask.astype(jnp.float32)) * -10000.0).reshape(B, 1, S)

    def act_spec():
        return pl.BlockSpec((1, S, H), lambda b, l: (b, 0, 0))

    def shared(shape):
        return pl.BlockSpec(shape, lambda b, l: (0,) * len(shape))

    def per_layer(shape):
        nd = len(shape)
        return pl.BlockSpec((1,) + shape, lambda b, l: (l,) + (0,) * nd)

    lw = params["layers"]
    kernel = functools.partial(_bert_kernel, num_heads=nH,
                               scale=1.0 / math.sqrt(H // nH), eps=cfg["eps"])

    return pl.pallas_call(
        kernel,
        out_shape=jax.ShapeDtypeStruct((B, S, H), jnp.float32),
        grid=(B, L),
        in_specs=[
            act_spec(),                                        # x (embedding sum)
            pl.BlockSpec((1, 1, S), lambda b, l: (b, 0, 0)),   # additive mask
            shared((1, H)), shared((1, H)),                    # embedding LN gamma / beta
            per_layer((H, 3 * H)),                             # wqkv  (bf16)
            per_layer((1, 3 * H)),                             # bqkv
            per_layer((H, H)),                                 # wo    (bf16)
            per_layer((1, H)),                                 # bo
            per_layer((1, H)), per_layer((1, H)),              # ln1 gamma / beta
            per_layer((H, I)),                                 # w1    (bf16)
            per_layer((1, I)),                                 # b1
            per_layer((I, H)),                                 # w2    (bf16)
            per_layer((1, H)),                                 # b2
            per_layer((1, H)), per_layer((1, H)),              # ln2 gamma / beta
        ],
        out_specs=act_spec(),
        scratch_shapes=[
            pltpu.VMEM((S, H), jnp.float32),                   # resident activation
            pltpu.VMEM((S, H), jnp.float32),                   # per-head context concat
        ],
        compiler_params=pltpu.CompilerParams(
            dimension_semantics=("parallel", "arbitrary")),
    )(x, mask_add, params["emb_ln_g"], params["emb_ln_b"],
      lw["wqkv"], lw["bqkv"], lw["wo"], lw["bo"],
      lw["ln1_g"], lw["ln1_b"], lw["w1"], lw["b1"], lw["w2"], lw["b2"],
      lw["ln2_g"], lw["ln2_b"])


# ----------------------------- main -----------------------------
if __name__ == "__main__":
    key = jax.random.PRNGKey(0)
    k_param, k_ids = jax.random.split(key)

    params = init_params(k_param, CFG)

    # Synthetic "tokenized" batch (the HF tokenizer itself is untranslatable).
    input_ids = jax.random.randint(k_ids, (BATCH, SEQ), 0, CFG["vocab"], dtype=jnp.int32)
    # sequence 0 is full length, sequence 1 has 2 padding positions
    attention_mask = jnp.array(
        [[1, 1, 1, 1, 1, 1, 1, 1],
         [1, 1, 1, 1, 1, 1, 0, 0]], dtype=jnp.int32)

    last_hidden_state = jax.jit(text_feature_extract)(params, input_ids, attention_mask)
    jax.block_until_ready(last_hidden_state)

    assert last_hidden_state.shape == (BATCH, SEQ, CFG["hidden"])
    assert last_hidden_state.dtype == jnp.float32
    assert bool(jnp.all(jnp.isfinite(last_hidden_state)))
    print("KERNEL_OK")
</pallas_src>

<mosaic_0001>
module attributes {stable_mosaic.version = 11 : i64} {
  func.func @_bert_kernel(%arg0: i32, %arg1: i32, %arg2: memref<1x8x32xf32, #tpu.memory_space<vmem>>, %arg3: memref<1x1x8xf32, #tpu.memory_space<vmem>>, %arg4: memref<1x32xf32, #tpu.memory_space<vmem>>, %arg5: memref<1x32xf32, #tpu.memory_space<vmem>>, %arg6: memref<1x32x96xbf16, #tpu.memory_space<vmem>>, %arg7: memref<1x1x96xf32, #tpu.memory_space<vmem>>, %arg8: memref<1x32x32xbf16, #tpu.memory_space<vmem>>, %arg9: memref<1x1x32xf32, #tpu.memory_space<vmem>>, %arg10: memref<1x1x32xf32, #tpu.memory_space<vmem>>, %arg11: memref<1x1x32xf32, #tpu.memory_space<vmem>>, %arg12: memref<1x32x64xbf16, #tpu.memory_space<vmem>>, %arg13: memref<1x1x64xf32, #tpu.memory_space<vmem>>, %arg14: memref<1x64x32xbf16, #tpu.memory_space<vmem>>, %arg15: memref<1x1x32xf32, #tpu.memory_space<vmem>>, %arg16: memref<1x1x32xf32, #tpu.memory_space<vmem>>, %arg17: memref<1x1x32xf32, #tpu.memory_space<vmem>>, %arg18: memref<1x8x32xf32, #tpu.memory_space<vmem>>, %arg19: memref<8x32xf32, #tpu.memory_space<vmem>>, %arg20: memref<8x32xf32, #tpu.memory_space<vmem>>) attributes {dimension_semantics = [#tpu.dimension_semantics<parallel>, #tpu.dimension_semantics<arbitrary>], iteration_bounds = array<i64: 2, 2>, scalar_prefetch = 0 : i64, scratch_operands = 2 : i64, tpu.core_type = #tpu.core_type<tc>, window_params = [{transform_indices = @transform_0, window_bounds = array<i64: 1, 8, 32>}, {transform_indices = @transform_1, window_bounds = array<i64: 1, 1, 8>}, {pipeline_mode = #tpu.pipeline_mode<synchronous>, transform_indices = @transform_2, window_bounds = array<i64: 1, 32>}, {pipeline_mode = #tpu.pipeline_mode<synchronous>, transform_indices = @transform_3, window_bounds = array<i64: 1, 32>}, {transform_indices = @transform_4, window_bounds = array<i64: 1, 32, 96>}, {transform_indices = @transform_5, window_bounds = array<i64: 1, 1, 96>}, {transform_indices = @transform_6, window_bounds = array<i64: 1, 32, 32>}, {transform_indices = @transform_7, window_bounds = array<i64: 1, 1, 32>}, {transform_indices = @transform_8, window_bounds = array<i64: 1, 1, 32>}, {transform_indices = @transform_9, window_bounds = array<i64: 1, 1, 32>}, {transform_indices = @transform_10, window_bounds = array<i64: 1, 32, 64>}, {transform_indices = @transform_11, window_bounds = array<i64: 1, 1, 64>}, {transform_indices = @transform_12, window_bounds = array<i64: 1, 64, 32>}, {transform_indices = @transform_13, window_bounds = array<i64: 1, 1, 32>}, {transform_indices = @transform_14, window_bounds = array<i64: 1, 1, 32>}, {transform_indices = @transform_15, window_bounds = array<i64: 1, 1, 32>}, {transform_indices = @transform_16, window_bounds = array<i64: 1, 8, 32>}]} {
    %c0_i32 = arith.constant 0 : i32
    %0 = arith.cmpi eq, %arg1, %c0_i32 : i32
    %1 = arith.extui %0 : i1 to i32
    %c0_i32_0 = arith.constant 0 : i32
    %2 = arith.cmpi ne, %1, %c0_i32_0 : i32
    scf.if %2 {
      %c0_88 = arith.constant 0 : index
      %c0_89 = arith.constant 0 : index
      %c0_90 = arith.constant 0 : index
      %206 = vector.load %arg2[%c0_88, %c0_89, %c0_90] : memref<1x8x32xf32, #tpu.memory_space<vmem>>, vector<1x8x32xf32>
      %207 = vector.shape_cast %206 : vector<1x8x32xf32> to vector<8x32xf32>
      %c0_91 = arith.constant 0 : index
      %c0_92 = arith.constant 0 : index
      %208 = vector.load %arg4[%c0_91, %c0_92] : memref<1x32xf32, #tpu.memory_space<vmem>>, vector<1x32xf32>
      %c0_93 = arith.constant 0 : index
      %c0_94 = arith.constant 0 : index
      %209 = vector.load %arg5[%c0_93, %c0_94] : memref<1x32xf32, #tpu.memory_space<vmem>>, vector<1x32xf32>
      %cst_95 = arith.constant dense<0.000000e+00> : vector<8xf32>
      %210 = vector.multi_reduction <add>, %207, %cst_95 [1] : vector<8x32xf32> to vector<8xf32>
      %211 = vector.shape_cast %210 : vector<8xf32> to vector<8x1xf32>
      %cst_96 = arith.constant 3.200000e+01 : f32
      %212 = vector.broadcast %cst_96 : f32 to vector<8x1xf32>
      %213 = arith.divf %211, %212 : vector<8x1xf32>
      %214 = vector.broadcast %213 : vector<8x1xf32> to vector<8x32xf32>
      %215 = arith.subf %207, %214 : vector<8x32xf32>
      %216 = arith.mulf %215, %215 : vector<8x32xf32>
      %cst_97 = arith.constant dense<0.000000e+00> : vector<8xf32>
      %217 = vector.multi_reduction <add>, %216, %cst_97 [1] : vector<8x32xf32> to vector<8xf32>
      %218 = vector.shape_cast %217 : vector<8xf32> to vector<8x1xf32>
      %cst_98 = arith.constant 3.200000e+01 : f32
      %219 = vector.broadcast %cst_98 : f32 to vector<8x1xf32>
      %220 = arith.divf %218, %219 : vector<8x1xf32>
      %221 = vector.broadcast %213 : vector<8x1xf32> to vector<8x32xf32>
      %222 = arith.subf %207, %221 : vector<8x32xf32>
      %cst_99 = arith.constant 9.99999996E-13 : f32
      %223 = vector.broadcast %cst_99 : f32 to vector<8x1xf32>
      %224 = arith.addf %220, %223 : vector<8x1xf32>
      %225 = math.rsqrt %224 : vector<8x1xf32>
      %226 = vector.broadcast %225 : vector<8x1xf32> to vector<8x32xf32>
      %227 = arith.mulf %222, %226 : vector<8x32xf32>
      %228 = vector.broadcast %208 : vector<1x32xf32> to vector<8x32xf32>
      %229 = arith.mulf %227, %228 : vector<8x32xf32>
      %230 = vector.broadcast %209 : vector<1x32xf32> to vector<8x32xf32>
      %231 = arith.addf %229, %230 : vector<8x32xf32>
      %c0_100 = arith.constant 0 : index
      %c0_101 = arith.constant 0 : index
      %232 = vector.load %arg19[%c0_100, %c0_101] : memref<8x32xf32, #tpu.memory_space<vmem>>, vector<8x32xf32>
      tpu.vector_store %arg19[%c0_100, %c0_101], %231 {strides = array<i32>} : memref<8x32xf32, #tpu.memory_space<vmem>>, vector<8x32xf32>,
    } else {
    }
    %c0 = arith.constant 0 : index
    %c0_1 = arith.constant 0 : index
    %3 = vector.load %arg19[%c0, %c0_1] : memref<8x32xf32, #tpu.memory_space<vmem>>, vector<8x32xf32>
    %c0_2 = arith.constant 0 : index
    %c0_3 = arith.constant 0 : index
    %c0_4 = arith.constant 0 : index
    %4 = vector.load %arg3[%c0_2, %c0_3, %c0_4] : memref<1x1x8xf32, #tpu.memory_space<vmem>>, vector<1x1x8xf32>
    %5 = vector.shape_cast %4 : vector<1x1x8xf32> to vector<1x8xf32>
    %6 = arith.truncf %3 : vector<8x32xf32> to vector<8x32xbf16>
    %c0_5 = arith.constant 0 : index
    %c0_6 = arith.constant 0 : index
    %c0_7 = arith.constant 0 : index
    %7 = vector.load %arg6[%c0_5, %c0_6, %c0_7] : memref<1x32x96xbf16, #tpu.memory_space<vmem>>, vector<1x32x96xbf16>
    %8 = vector.shape_cast %7 : vector<1x32x96xbf16> to vector<32x96xbf16>
    %cst = arith.constant dense<0.000000e+00> : vector<8x96xf32>
    %9 = tpu.matmul %6, %8, %cst {dimension_numbers = #tpu.dot_dimension_numbers<[1], [0], [0], [1], [0, 0, 1, 1], [], []>} : vector<8x32xbf16>, vector<32x96xbf16>, vector<8x96xf32> -> vector<8x96xf32>
    %c0_8 = arith.constant 0 : index
    %c0_9 = arith.constant 0 : index
    %c0_10 = arith.constant 0 : index
    %10 = vector.load %arg7[%c0_8, %c0_9, %c0_10] : memref<1x1x96xf32, #tpu.memory_space<vmem>>, vector<1x1x96xf32>
    %11 = vector.shape_cast %10 : vector<1x1x96xf32> to vector<1x96xf32>
    %12 = vector.broadcast %11 : vector<1x96xf32> to vector<8x96xf32>
    %13 = arith.addf %9, %12 : vector<8x96xf32>
    %14 = vector.extract_strided_slice %13 {offsets = [0, 0], sizes = [8, 8], strides = [1, 1]} : vector<8x96xf32> to vector<8x8xf32>
    %15 = arith.truncf %14 : vector<8x8xf32> to vector<8x8xbf16>
    %16 = vector.extract_strided_slice %13 {offsets = [0, 32], sizes = [8, 8], strides = [1, 1]} : vector<8x96xf32> to vector<8x8xf32>
    %17 = arith.truncf %16 : vector<8x8xf32> to vector<8x8xbf16>
    %18 = vector.extract_strided_slice %13 {offsets = [0, 64], sizes = [8, 8], strides = [1, 1]} : vector<8x96xf32> to vector<8x8xf32>
    %19 = arith.truncf %18 : vector<8x8xf32> to vector<8x8xbf16>
    %cst_11 = arith.constant dense<0.000000e+00> : vector<8x8xf32>
    %20 = tpu.matmul %15, %17, %cst_11 {dimension_numbers = #tpu.dot_dimension_numbers<[1], [1], [0], [0], [0, 0, 1, 0], [], []>} : vector<8x8xbf16>, vector<8x8xbf16>, vector<8x8xf32> -> vector<8x8xf32>
    %cst_12 = arith.constant 0.353553385 : f32
    %21 = vector.broadcast %cst_12 : f32 to vector<8x8xf32>
    %22 = arith.mulf %20, %21 : vector<8x8xf32>
    %23 = vector.broadcast %5 : vector<1x8xf32> to vector<8x8xf32>
    %24 = arith.addf %22, %23 : vector<8x8xf32>
    %cst_13 = arith.constant dense<0xFF800000> : vector<8xf32>
    %25 = vector.multi_reduction <maximumf>, %24, %cst_13 [1] : vector<8x8xf32> to vector<8xf32>
    %26 = vector.shape_cast %25 : vector<8xf32> to vector<8x1xf32>
    %27 = vector.broadcast %26 : vector<8x1xf32> to vector<8x8xf32>
    %28 = arith.subf %24, %27 : vector<8x8xf32>
    %29 = math.exp %28 : vector<8x8xf32>
    %cst_14 = arith.constant dense<0.000000e+00> : vector<8xf32>
    %30 = vector.multi_reduction <add>, %29, %cst_14 [1] : vector<8x8xf32> to vector<8xf32>
    %31 = vector.shape_cast %30 : vector<8xf32> to vector<8x1xf32>
    %32 = tpu.reciprocal %31 {approx = true} : vector<8x1xf32> -> vector<8x1xf32>
    %33 = vector.broadcast %32 : vector<8x1xf32> to vector<8x8xf32>
    %34 = arith.mulf %29, %33 : vector<8x8xf32>
    %35 = arith.truncf %34 : vector<8x8xf32> to vector<8x8xbf16>
    %cst_15 = arith.constant dense<0.000000e+00> : vector<8x8xf32>
    %36 = tpu.matmul %35, %19, %cst_15 {dimension_numbers = #tpu.dot_dimension_numbers<[1], [0], [0], [1], [0, 0, 1, 1], [], []>} : vector<8x8xbf16>, vector<8x8xbf16>, vector<8x8xf32> -> vector<8x8xf32>
    %c0_16 = arith.constant 0 : index
    %c0_17 = arith.constant 0 : index
    %37 = vector.load %arg20[%c0_16, %c0_17] : memref<8x32xf32, #tpu.memory_space<vmem>>, vector<8x8xf32>
    tpu.vector_store %arg20[%c0_16, %c0_17], %36 {strides = array<i32>} : memref<8x32xf32, #tpu.memory_space<vmem>>, vector<8x8xf32>,
    %38 = vector.extract_strided_slice %13 {offsets = [0, 8], sizes = [8, 8], strides = [1, 1]} : vector<8x96xf32> to vector<8x8xf32>
    %39 = arith.truncf %38 : vector<8x8xf32> to vector<8x8xbf16>
    %40 = vector.extract_strided_slice %13 {offsets = [0, 40], sizes = [8, 8], strides = [1, 1]} : vector<8x96xf32> to vector<8x8xf32>
    %41 = arith.truncf %40 : vector<8x8xf32> to vector<8x8xbf16>
    %42 = vector.extract_strided_slice %13 {offsets = [0, 72], sizes = [8, 8], strides = [1, 1]} : vector<8x96xf32> to vector<8x8xf32>
    %43 = arith.truncf %42 : vector<8x8xf32> to vector<8x8xbf16>
    %cst_18 = arith.constant dense<0.000000e+00> : vector<8x8xf32>
    %44 = tpu.matmul %39, %41, %cst_18 {dimension_numbers = #tpu.dot_dimension_numbers<[1], [1], [0], [0], [0, 0, 1, 0], [], []>} : vector<8x8xbf16>, vector<8x8xbf16>, vector<8x8xf32> -> vector<8x8xf32>
    %cst_19 = arith.constant 0.353553385 : f32
    %45 = vector.broadcast %cst_19 : f32 to vector<8x8xf32>
    %46 = arith.mulf %44, %45 : vector<8x8xf32>
    %47 = vector.broadcast %5 : vector<1x8xf32> to vector<8x8xf32>
    %48 = arith.addf %46, %47 : vector<8x8xf32>
    %cst_20 = arith.constant dense<0xFF800000> : vector<8xf32>
    %49 = vector.multi_reduction <maximumf>, %48, %cst_20 [1] : vector<8x8xf32> to vector<8xf32>
    %50 = vector.shape_cast %49 : vector<8xf32> to vector<8x1xf32>
    %51 = vector.broadcast %50 : vector<8x1xf32> to vector<8x8xf32>
    %52 = arith.subf %48, %51 : vector<8x8xf32>
    %53 = math.exp %52 : vector<8x8xf32>
    %cst_21 = arith.constant dense<0.000000e+00> : vector<8xf32>
    %54 = vector.multi_reduction <add>, %53, %cst_21 [1] : vector<8x8xf32> to vector<8xf32>
    %55 = vector.shape_cast %54 : vector<8xf32> to vector<8x1xf32>
    %56 = tpu.reciprocal %55 {approx = true} : vector<8x1xf32> -> vector<8x1xf32>
    %57 = vector.broadcast %56 : vector<8x1xf32> to vector<8x8xf32>
    %58 = arith.mulf %53, %57 : vector<8x8xf32>
    %59 = arith.truncf %58 : vector<8x8xf32> to vector<8x8xbf16>
    %cst_22 = arith.constant dense<0.000000e+00> : vector<8x8xf32>
    %60 = tpu.matmul %59, %43, %cst_22 {dimension_numbers = #tpu.dot_dimension_numbers<[1], [0], [0], [1], [0, 0, 1, 1], [], []>} : vector<8x8xbf16>, vector<8x8xbf16>, vector<8x8xf32> -> vector<8x8xf32>
    %c0_23 = arith.constant 0 : index
    %c8 = arith.constant 8 : index
    %61 = vector.load %arg20[%c0_23, %c8] : memref<8x32xf32, #tpu.memory_space<vmem>>, vector<8x8xf32>
    tpu.vector_store %arg20[%c0_23, %c8], %60 {strides = array<i32>} : memref<8x32xf32, #tpu.memory_space<vmem>>, vector<8x8xf32>,
    %62 = vector.extract_strided_slice %13 {offsets = [0, 16], sizes = [8, 8], strides = [1, 1]} : vector<8x96xf32> to vector<8x8xf32>
    %63 = arith.truncf %62 : vector<8x8xf32> to vector<8x8xbf16>
    %64 = vector.extract_strided_slice %13 {offsets = [0, 48], sizes = [8, 8], strides = [1, 1]} : vector<8x96xf32> to vector<8x8xf32>
    %65 = arith.truncf %64 : vector<8x8xf32> to vector<8x8xbf16>
    %66 = vector.extract_strided_slice %13 {offsets = [0, 80], sizes = [8, 8], strides = [1, 1]} : vector<8x96xf32> to vector<8x8xf32>
    %67 = arith.truncf %66 : vector<8x8xf32> to vector<8x8xbf16>
    %cst_24 = arith.constant dense<0.000000e+00> : vector<8x8xf32>
    %68 = tpu.matmul %63, %65, %cst_24 {dimension_numbers = #tpu.dot_dimension_numbers<[1], [1], [0], [0], [0, 0, 1, 0], [], []>} : vector<8x8xbf16>, vector<8x8xbf16>, vector<8x8xf32> -> vector<8x8xf32>
    %cst_25 = arith.constant 0.353553385 : f32
    %69 = vector.broadcast %cst_25 : f32 to vector<8x8xf32>
    %70 = arith.mulf %68, %69 : vector<8x8xf32>
    %71 = vector.broadcast %5 : vector<1x8xf32> to vector<8x8xf32>
    %72 = arith.addf %70, %71 : vector<8x8xf32>
    %cst_26 = arith.constant dense<0xFF800000> : vector<8xf32>
    %73 = vector.multi_reduction <maximumf>, %72, %cst_26 [1] : vector<8x8xf32> to vector<8xf32>
    %74 = vector.shape_cast %73 : vector<8xf32> to vector<8x1xf32>
    %75 = vector.broadcast %74 : vector<8x1xf32> to vector<8x8xf32>
    %76 = arith.subf %72, %75 : vector<8x8xf32>
    %77 = math.exp %76 : vector<8x8xf32>
    %cst_27 = arith.constant dense<0.000000e+00> : vector<8xf32>
    %78 = vector.multi_reduction <add>, %77, %cst_27 [1] : vector<8x8xf32> to vector<8xf32>
    %79 = vector.shape_cast %78 : vector<8xf32> to vector<8x1xf32>
    %80 = tpu.reciprocal %79 {approx = true} : vector<8x1xf32> -> vector<8x1xf32>
    %81 = vector.broadcast %80 : vector<8x1xf32> to vector<8x8xf32>
    %82 = arith.mulf %77, %81 : vector<8x8xf32>
    %83 = arith.truncf %82 : vector<8x8xf32> to vector<8x8xbf16>
    %cst_28 = arith.constant dense<0.000000e+00> : vector<8x8xf32>
    %84 = tpu.matmul %83, %67, %cst_28 {dimension_numbers = #tpu.dot_dimension_numbers<[1], [0], [0], [1], [0, 0, 1, 1], [], []>} : vector<8x8xbf16>, vector<8x8xbf16>, vector<8x8xf32> -> vector<8x8xf32>
    %c0_29 = arith.constant 0 : index
    %c16 = arith.constant 16 : index
    %85 = vector.load %arg20[%c0_29, %c16] : memref<8x32xf32, #tpu.memory_space<vmem>>, vector<8x8xf32>
    tpu.vector_store %arg20[%c0_29, %c16], %84 {strides = array<i32>} : memref<8x32xf32, #tpu.memory_space<vmem>>, vector<8x8xf32>,
    %86 = vector.extract_strided_slice %13 {offsets = [0, 24], sizes = [8, 8], strides = [1, 1]} : vector<8x96xf32> to vector<8x8xf32>
    %87 = arith.truncf %86 : vector<8x8xf32> to vector<8x8xbf16>
    %88 = vector.extract_strided_slice %13 {offsets = [0, 56], sizes = [8, 8], strides = [1, 1]} : vector<8x96xf32> to vector<8x8xf32>
    %89 = arith.truncf %88 : vector<8x8xf32> to vector<8x8xbf16>
    %90 = vector.extract_strided_slice %13 {offsets = [0, 88], sizes = [8, 8], strides = [1, 1]} : vector<8x96xf32> to vector<8x8xf32>
    %91 = arith.truncf %90 : vector<8x8xf32> to vector<8x8xbf16>
    %cst_30 = arith.constant dense<0.000000e+00> : vector<8x8xf32>
    %92 = tpu.matmul %87, %89, %cst_30 {dimension_numbers = #tpu.dot_dimension_numbers<[1], [1], [0], [0], [0, 0, 1, 0], [], []>} : vector<8x8xbf16>, vector<8x8xbf16>, vector<8x8xf32> -> vector<8x8xf32>
    %cst_31 = arith.constant 0.353553385 : f32
    %93 = vector.broadcast %cst_31 : f32 to vector<8x8xf32>
    %94 = arith.mulf %92, %93 : vector<8x8xf32>
    %95 = vector.broadcast %5 : vector<1x8xf32> to vector<8x8xf32>
    %96 = arith.addf %94, %95 : vector<8x8xf32>
    %cst_32 = arith.constant dense<0xFF800000> : vector<8xf32>
    %97 = vector.multi_reduction <maximumf>, %96, %cst_32 [1] : vector<8x8xf32> to vector<8xf32>
    %98 = vector.shape_cast %97 : vector<8xf32> to vector<8x1xf32>
    %99 = vector.broadcast %98 : vector<8x1xf32> to vector<8x8xf32>
    %100 = arith.subf %96, %99 : vector<8x8xf32>
    %101 = math.exp %100 : vector<8x8xf32>
    %cst_33 = arith.constant dense<0.000000e+00> : vector<8xf32>
    %102 = vector.multi_reduction <add>, %101, %cst_33 [1] : vector<8x8xf32> to vector<8xf32>
    %103 = vector.shape_cast %102 : vector<8xf32> to vector<8x1xf32>
    %104 = tpu.reciprocal %103 {approx = true} : vector<8x1xf32> -> vector<8x1xf32>
    %105 = vector.broadcast %104 : vector<8x1xf32> to vector<8x8xf32>
    %106 = arith.mulf %101, %105 : vector<8x8xf32>
    %107 = arith.truncf %106 : vector<8x8xf32> to vector<8x8xbf16>
    %cst_34 = arith.constant dense<0.000000e+00> : vector<8x8xf32>
    %108 = tpu.matmul %107, %91, %cst_34 {dimension_numbers = #tpu.dot_dimension_numbers<[1], [0], [0], [1], [0, 0, 1, 1], [], []>} : vector<8x8xbf16>, vector<8x8xbf16>, vector<8x8xf32> -> vector<8x8xf32>
    %c0_35 = arith.constant 0 : index
    %c24 = arith.constant 24 : index
    %109 = vector.load %arg20[%c0_35, %c24] : memref<8x32xf32, #tpu.memory_space<vmem>>, vector<8x8xf32>
    tpu.vector_store %arg20[%c0_35, %c24], %108 {strides = array<i32>} : memref<8x32xf32, #tpu.memory_space<vmem>>, vector<8x8xf32>,
    %c0_36 = arith.constant 0 : index
    %c0_37 = arith.constant 0 : index
    %110 = vector.load %arg20[%c0_36, %c0_37] : memref<8x32xf32, #tpu.memory_space<vmem>>, vector<8x32xf32>
    %111 = arith.truncf %110 : vector<8x32xf32> to vector<8x32xbf16>
    %c0_38 = arith.constant 0 : index
    %c0_39 = arith.constant 0 : index
    %c0_40 = arith.constant 0 : index
    %112 = vector.load %arg8[%c0_38, %c0_39, %c0_40] : memref<1x32x32xbf16, #tpu.memory_space<vmem>>, vector<1x32x32xbf16>
    %113 = vector.shape_cast %112 : vector<1x32x32xbf16> to vector<32x32xbf16>
    %cst_41 = arith.constant dense<0.000000e+00> : vector<8x32xf32>
    %114 = tpu.matmul %111, %113, %cst_41 {dimension_numbers = #tpu.dot_dimension_numbers<[1], [0], [0], [1], [0, 0, 1, 1], [], []>} : vector<8x32xbf16>, vector<32x32xbf16>, vector<8x32xf32> -> vector<8x32xf32>
    %c0_42 = arith.constant 0 : index
    %c0_43 = arith.constant 0 : index
    %c0_44 = arith.constant 0 : index
    %115 = vector.load %arg9[%c0_42, %c0_43, %c0_44] : memref<1x1x32xf32, #tpu.memory_space<vmem>>, vector<1x1x32xf32>
    %116 = vector.shape_cast %115 : vector<1x1x32xf32> to vector<1x32xf32>
    %117 = vector.broadcast %116 : vector<1x32xf32> to vector<8x32xf32>
    %118 = arith.addf %114, %117 : vector<8x32xf32>
    %119 = arith.addf %118, %3 : vector<8x32xf32>
    %c0_45 = arith.constant 0 : index
    %c0_46 = arith.constant 0 : index
    %c0_47 = arith.constant 0 : index
    %120 = vector.load %arg10[%c0_45, %c0_46, %c0_47] : memref<1x1x32xf32, #tpu.memory_space<vmem>>, vector<1x1x32xf32>
    %121 = vector.shape_cast %120 : vector<1x1x32xf32> to vector<1x32xf32>
    %c0_48 = arith.constant 0 : index
    %c0_49 = arith.constant 0 : index
    %c0_50 = arith.constant 0 : index
    %122 = vector.load %arg11[%c0_48, %c0_49, %c0_50] : memref<1x1x32xf32, #tpu.memory_space<vmem>>, vector<1x1x32xf32>
    %123 = vector.shape_cast %122 : vector<1x1x32xf32> to vector<1x32xf32>
    %cst_51 = arith.constant dense<0.000000e+00> : vector<8xf32>
    %124 = vector.multi_reduction <add>, %119, %cst_51 [1] : vector<8x32xf32> to vector<8xf32>
    %125 = vector.shape_cast %124 : vector<8xf32> to vector<8x1xf32>
    %cst_52 = arith.constant 3.200000e+01 : f32
    %126 = vector.broadcast %cst_52 : f32 to vector<8x1xf32>
    %127 = arith.divf %125, %126 : vector<8x1xf32>
    %128 = vector.broadcast %127 : vector<8x1xf32> to vector<8x32xf32>
    %129 = arith.subf %119, %128 : vector<8x32xf32>
    %130 = arith.mulf %129, %129 : vector<8x32xf32>
    %cst_53 = arith.constant dense<0.000000e+00> : vector<8xf32>
    %131 = vector.multi_reduction <add>, %130, %cst_53 [1] : vector<8x32xf32> to vector<8xf32>
    %132 = vector.shape_cast %131 : vector<8xf32> to vector<8x1xf32>
    %cst_54 = arith.constant 3.200000e+01 : f32
    %133 = vector.broadcast %cst_54 : f32 to vector<8x1xf32>
    %134 = arith.divf %132, %133 : vector<8x1xf32>
    %135 = vector.broadcast %127 : vector<8x1xf32> to vector<8x32xf32>
    %136 = arith.subf %119, %135 : vector<8x32xf32>
    %cst_55 = arith.constant 9.99999996E-13 : f32
    %137 = vector.broadcast %cst_55 : f32 to vector<8x1xf32>
    %138 = arith.addf %134, %137 : vector<8x1xf32>
    %139 = math.rsqrt %138 : vector<8x1xf32>
    %140 = vector.broadcast %139 : vector<8x1xf32> to vector<8x32xf32>
    %141 = arith.mulf %136, %140 : vector<8x32xf32>
    %142 = vector.broadcast %121 : vector<1x32xf32> to vector<8x32xf32>
    %143 = arith.mulf %141, %142 : vector<8x32xf32>
    %144 = vector.broadcast %123 : vector<1x32xf32> to vector<8x32xf32>
    %145 = arith.addf %143, %144 : vector<8x32xf32>
    %146 = arith.truncf %145 : vector<8x32xf32> to vector<8x32xbf16>
    %c0_56 = arith.constant 0 : index
    %c0_57 = arith.constant 0 : index
    %c0_58 = arith.constant 0 : index
    %147 = vector.load %arg12[%c0_56, %c0_57, %c0_58] : memref<1x32x64xbf16, #tpu.memory_space<vmem>>, vector<1x32x64xbf16>
    %148 = vector.shape_cast %147 : vector<1x32x64xbf16> to vector<32x64xbf16>
    %cst_59 = arith.constant dense<0.000000e+00> : vector<8x64xf32>
    %149 = tpu.matmul %146, %148, %cst_59 {dimension_numbers = #tpu.dot_dimension_numbers<[1], [0], [0], [1], [0, 0, 1, 1], [], []>} : vector<8x32xbf16>, vector<32x64xbf16>, vector<8x64xf32> -> vector<8x64xf32>
    %c0_60 = arith.constant 0 : index
    %c0_61 = arith.constant 0 : index
    %c0_62 = arith.constant 0 : index
    %150 = vector.load %arg13[%c0_60, %c0_61, %c0_62] : memref<1x1x64xf32, #tpu.memory_space<vmem>>, vector<1x1x64xf32>
    %151 = vector.shape_cast %150 : vector<1x1x64xf32> to vector<1x64xf32>
    %152 = vector.broadcast %151 : vector<1x64xf32> to vector<8x64xf32>
    %153 = arith.addf %149, %152 : vector<8x64xf32>
    %154 = arith.mulf %153, %153 : vector<8x64xf32>
    %155 = arith.mulf %153, %154 : vector<8x64xf32>
    %cst_63 = arith.constant 4.471500e-02 : f32
    %156 = vector.broadcast %cst_63 : f32 to vector<8x64xf32>
    %157 = arith.mulf %156, %155 : vector<8x64xf32>
    %158 = arith.addf %153, %157 : vector<8x64xf32>
    %cst_64 = arith.constant 0.797884583 : f32
    %159 = vector.broadcast %cst_64 : f32 to vector<8x64xf32>
    %160 = arith.mulf %159, %158 : vector<8x64xf32>
    %161 = math.tanh %160 : vector<8x64xf32>
    %cst_65 = arith.constant 1.000000e+00 : f32
    %162 = vector.broadcast %cst_65 : f32 to vector<8x64xf32>
    %163 = arith.addf %162, %161 : vector<8x64xf32>
    %cst_66 = arith.constant 5.000000e-01 : f32
    %164 = vector.broadcast %cst_66 : f32 to vector<8x64xf32>
    %165 = arith.mulf %164, %163 : vector<8x64xf32>
    %166 = arith.mulf %153, %165 : vector<8x64xf32>
    %167 = arith.truncf %166 : vector<8x64xf32> to vector<8x64xbf16>
    %c0_67 = arith.constant 0 : index
    %c0_68 = arith.constant 0 : index
    %c0_69 = arith.constant 0 : index
    %168 = vector.load %arg14[%c0_67, %c0_68, %c0_69] : memref<1x64x32xbf16, #tpu.memory_space<vmem>>, vector<1x64x32xbf16>
    %169 = vector.shape_cast %168 : vector<1x64x32xbf16> to vector<64x32xbf16>
    %cst_70 = arith.constant dense<0.000000e+00> : vector<8x32xf32>
    %170 = tpu.matmul %167, %169, %cst_70 {dimension_numbers = #tpu.dot_dimension_numbers<[1], [0], [0], [1], [0, 0, 1, 1], [], []>} : vector<8x64xbf16>, vector<64x32xbf16>, vector<8x32xf32> -> vector<8x32xf32>
    %c0_71 = arith.constant 0 : index
    %c0_72 = arith.constant 0 : index
    %c0_73 = arith.constant 0 : index
    %171 = vector.load %arg15[%c0_71, %c0_72, %c0_73] : memref<1x1x32xf32, #tpu.memory_space<vmem>>, vector<1x1x32xf32>
    %172 = vector.shape_cast %171 : vector<1x1x32xf32> to vector<1x32xf32>
    %173 = vector.broadcast %172 : vector<1x32xf32> to vector<8x32xf32>
    %174 = arith.addf %170, %173 : vector<8x32xf32>
    %175 = arith.addf %174, %145 : vector<8x32xf32>
    %c0_74 = arith.constant 0 : index
    %c0_75 = arith.constant 0 : index
    %c0_76 = arith.constant 0 : index
    %176 = vector.load %arg16[%c0_74, %c0_75, %c0_76] : memref<1x1x32xf32, #tpu.memory_space<vmem>>, vector<1x1x32xf32>
    %177 = vector.shape_cast %176 : vector<1x1x32xf32> to vector<1x32xf32>
    %c0_77 = arith.constant 0 : index
    %c0_78 = arith.constant 0 : index
    %c0_79 = arith.constant 0 : index
    %178 = vector.load %arg17[%c0_77, %c0_78, %c0_79] : memref<1x1x32xf32, #tpu.memory_space<vmem>>, vector<1x1x32xf32>
    %179 = vector.shape_cast %178 : vector<1x1x32xf32> to vector<1x32xf32>
    %cst_80 = arith.constant dense<0.000000e+00> : vector<8xf32>
    %180 = vector.multi_reduction <add>, %175, %cst_80 [1] : vector<8x32xf32> to vector<8xf32>
    %181 = vector.shape_cast %180 : vector<8xf32> to vector<8x1xf32>
    %cst_81 = arith.constant 3.200000e+01 : f32
    %182 = vector.broadcast %cst_81 : f32 to vector<8x1xf32>
    %183 = arith.divf %181, %182 : vector<8x1xf32>
    %184 = vector.broadcast %183 : vector<8x1xf32> to vector<8x32xf32>
    %185 = arith.subf %175, %184 : vector<8x32xf32>
    %186 = arith.mulf %185, %185 : vector<8x32xf32>
    %cst_82 = arith.constant dense<0.000000e+00> : vector<8xf32>
    %187 = vector.multi_reduction <add>, %186, %cst_82 [1] : vector<8x32xf32> to vector<8xf32>
    %188 = vector.shape_cast %187 : vector<8xf32> to vector<8x1xf32>
    %cst_83 = arith.constant 3.200000e+01 : f32
    %189 = vector.broadcast %cst_83 : f32 to vector<8x1xf32>
    %190 = arith.divf %188, %189 : vector<8x1xf32>
    %191 = vector.broadcast %183 : vector<8x1xf32> to vector<8x32xf32>
    %192 = arith.subf %175, %191 : vector<8x32xf32>
    %cst_84 = arith.constant 9.99999996E-13 : f32
    %193 = vector.broadcast %cst_84 : f32 to vector<8x1xf32>
    %194 = arith.addf %190, %193 : vector<8x1xf32>
    %195 = math.rsqrt %194 : vector<8x1xf32>
    %196 = vector.broadcast %195 : vector<8x1xf32> to vector<8x32xf32>
    %197 = arith.mulf %192, %196 : vector<8x32xf32>
    %198 = vector.broadcast %177 : vector<1x32xf32> to vector<8x32xf32>
    %199 = arith.mulf %197, %198 : vector<8x32xf32>
    %200 = vector.broadcast %179 : vector<1x32xf32> to vector<8x32xf32>
    %201 = arith.addf %199, %200 : vector<8x32xf32>
    %c0_85 = arith.constant 0 : index
    %c0_86 = arith.constant 0 : index
    %202 = vector.load %arg19[%c0_85, %c0_86] : memref<8x32xf32, #tpu.memory_space<vmem>>, vector<8x32xf32>
    tpu.vector_store %arg19[%c0_85, %c0_86], %201 {strides = array<i32>} : memref<8x32xf32, #tpu.memory_space<vmem>>, vector<8x32xf32>,
    %c1_i32 = arith.constant 1 : i32
    %203 = arith.cmpi eq, %arg1, %c1_i32 : i32
    %204 = arith.extui %203 : i1 to i32
    %c0_i32_87 = arith.constant 0 : i32
    %205 = arith.cmpi ne, %204, %c0_i32_87 : i32
    scf.if %205 {
      %c0_88 = arith.constant 0 : index
      %c0_89 = arith.constant 0 : index
      %c0_90 = arith.constant 0 : index
      %206 = vector.load %arg18[%c0_88, %c0_89, %c0_90] : memref<1x8x32xf32, #tpu.memory_space<vmem>>, vector<1x8x32xf32>
      %207 = vector.shape_cast %206 : vector<1x8x32xf32> to vector<8x32xf32>
      %208 = vector.shape_cast %201 : vector<8x32xf32> to vector<1x8x32xf32>
      tpu.vector_store %arg18[%c0_88, %c0_89, %c0_90], %208 {strides = array<i32>} : memref<1x8x32xf32, #tpu.memory_space<vmem>>, vector<1x8x32xf32>,
    } else {
    }
    return
  }
  func.func @transform_0(%arg0: i32, %arg1: i32) -> (i32, i32, i32) {
    %c0_i32 = arith.constant 0 : i32
    %c0_i32_0 = arith.constant 0 : i32
    %c0_i32_1 = arith.constant 0 : i32
    return %arg0, %c0_i32, %c0_i32_0 : i32, i32, i32
  }
  func.func @transform_1(%arg0: i32, %arg1: i32) -> (i32, i32, i32) {
    %c0_i32 = arith.constant 0 : i32
    %c0_i32_0 = arith.constant 0 : i32
    %c0_i32_1 = arith.constant 0 : i32
    return %arg0, %c0_i32, %c0_i32_0 : i32, i32, i32
  }
  func.func @transform_2(%arg0: i32, %arg1: i32) -> (i32, i32) {
    %c0_i32 = arith.constant 0 : i32
    %c0_i32_0 = arith.constant 0 : i32
    %c0_i32_1 = arith.constant 0 : i32
    return %c0_i32, %c0_i32_0 : i32, i32
  }
  func.func @transform_3(%arg0: i32, %arg1: i32) -> (i32, i32) {
    %c0_i32 = arith.constant 0 : i32
    %c0_i32_0 = arith.constant 0 : i32
    %c0_i32_1 = arith.constant 0 : i32
    return %c0_i32, %c0_i32_0 : i32, i32
  }
  func.func @transform_4(%arg0: i32, %arg1: i32) -> (i32, i32, i32) {
    %c0_i32 = arith.constant 0 : i32
    %c0_i32_0 = arith.constant 0 : i32
    %c0_i32_1 = arith.constant 0 : i32
    return %arg1, %c0_i32, %c0_i32_0 : i32, i32, i32
  }
  func.func @transform_5(%arg0: i32, %arg1: i32) -> (i32, i32, i32) {
    %c0_i32 = arith.constant 0 : i32
    %c0_i32_0 = arith.constant 0 : i32
    %c0_i32_1 = arith.constant 0 : i32
    return %arg1, %c0_i32, %c0_i32_0 : i32, i32, i32
  }
  func.func @transform_6(%arg0: i32, %arg1: i32) -> (i32, i32, i32) {
    %c0_i32 = arith.constant 0 : i32
    %c0_i32_0 = arith.constant 0 : i32
    %c0_i32_1 = arith.constant 0 : i32
    return %arg1, %c0_i32, %c0_i32_0 : i32, i32, i32
  }
  func.func @transform_7(%arg0: i32, %arg1: i32) -> (i32, i32, i32) {
    %c0_i32 = arith.constant 0 : i32
    %c0_i32_0 = arith.constant 0 : i32
    %c0_i32_1 = arith.constant 0 : i32
    return %arg1, %c0_i32, %c0_i32_0 : i32, i32, i32
  }
  func.func @transform_8(%arg0: i32, %arg1: i32) -> (i32, i32, i32) {
    %c0_i32 = arith.constant 0 : i32
    %c0_i32_0 = arith.constant 0 : i32
    %c0_i32_1 = arith.constant 0 : i32
    return %arg1, %c0_i32, %c0_i32_0 : i32, i32, i32
  }
  func.func @transform_9(%arg0: i32, %arg1: i32) -> (i32, i32, i32) {
    %c0_i32 = arith.constant 0 : i32
    %c0_i32_0 = arith.constant 0 : i32
    %c0_i32_1 = arith.constant 0 : i32
    return %arg1, %c0_i32, %c0_i32_0 : i32, i32, i32
  }
  func.func @transform_10(%arg0: i32, %arg1: i32) -> (i32, i32, i32) {
    %c0_i32 = arith.constant 0 : i32
    %c0_i32_0 = arith.constant 0 : i32
    %c0_i32_1 = arith.constant 0 : i32
    return %arg1, %c0_i32, %c0_i32_0 : i32, i32, i32
  }
  func.func @transform_11(%arg0: i32, %arg1: i32) -> (i32, i32, i32) {
    %c0_i32 = arith.constant 0 : i32
    %c0_i32_0 = arith.constant 0 : i32
    %c0_i32_1 = arith.constant 0 : i32
    return %arg1, %c0_i32, %c0_i32_0 : i32, i32, i32
  }
  func.func @transform_12(%arg0: i32, %arg1: i32) -> (i32, i32, i32) {
    %c0_i32 = arith.constant 0 : i32
    %c0_i32_0 = arith.constant 0 : i32
    %c0_i32_1 = arith.constant 0 : i32
    return %arg1, %c0_i32, %c0_i32_0 : i32, i32, i32
  }
  func.func @transform_13(%arg0: i32, %arg1: i32) -> (i32, i32, i32) {
    %c0_i32 = arith.constant 0 : i32
    %c0_i32_0 = arith.constant 0 : i32
    %c0_i32_1 = arith.constant 0 : i32
    return %arg1, %c0_i32, %c0_i32_0 : i32, i32, i32
  }
  func.func @transform_14(%arg0: i32, %arg1: i32) -> (i32, i32, i32) {
    %c0_i32 = arith.constant 0 : i32
    %c0_i32_0 = arith.constant 0 : i32
    %c0_i32_1 = arith.constant 0 : i32
    return %arg1, %c0_i32, %c0_i32_0 : i32, i32, i32
  }
  func.func @transform_15(%arg0: i32, %arg1: i32) -> (i32, i32, i32) {
    %c0_i32 = arith.constant 0 : i32
    %c0_i32_0 = arith.constant 0 : i32
    %c0_i32_1 = arith.constant 0 : i32
    return %arg1, %c0_i32, %c0_i32_0 : i32, i32, i32
  }
  func.func @transform_16(%arg0: i32, %arg1: i32) -> (i32, i32, i32) {
    %c0_i32 = arith.constant 0 : i32
    %c0_i32_0 = arith.constant 0 : i32
    %c0_i32_1 = arith.constant 0 : i32
    return %arg0, %c0_i32, %c0_i32_0 : i32, i32, i32
  }
}

</mosaic_0001>

<llo_original>
// kernel: text_feature_extract.1
$region0: #{text_feature_extract.1}
  #allocation0 [shape = 'u32[]', space=smem, size = 0x4, offset = 0x4, fixed_abs, tag = 'smem constant byte address 0x4 - core index']
  #allocation1 [shape = 'u32[144,128]{1,0:T(1,128)}', space=vmem, size = 0x12000, scoped, tag = 'internal scratch']
  #allocation2 [shape = 'f32[8,32]{1,0:T(8,128)}', space=vmem, size = 0x1000, scoped, tag = 'scratch operand']
  #allocation3 [shape = 'f32[8,32]{1,0:T(8,128)}', space=vmem, size = 0x1000, scoped, tag = 'scratch operand']
  %s0 = inlined_call_operand.vmem [shape: f32[2,8,32], index: 0, kind: input, shape index: {}]
  %s1 = inlined_call_operand.vmem [shape: f32[2,1,8], index: 1, kind: input, shape index: {}]
  %s2 = inlined_call_operand.vmem [shape: f32[1,32], index: 2, kind: input, shape index: {}]
  %s3 = inlined_call_operand.vmem [shape: f32[1,32], index: 3, kind: input, shape index: {}]
  %s4 = inlined_call_operand.vmem [shape: bf16[2,32,96], index: 4, kind: input, shape index: {}]
  %s5 = inlined_call_operand.vmem [shape: f32[2,1,96], index: 5, kind: input, shape index: {}]
  %s6 = inlined_call_operand.vmem [shape: bf16[2,32,32], index: 6, kind: input, shape index: {}]
  %s7 = inlined_call_operand.vmem [shape: f32[2,1,32], index: 7, kind: input, shape index: {}]
  %s8 = inlined_call_operand.vmem [shape: f32[2,1,32], index: 8, kind: input, shape index: {}]
  %s9 = inlined_call_operand.vmem [shape: f32[2,1,32], index: 9, kind: input, shape index: {}]
  %s10 = inlined_call_operand.vmem [shape: bf16[2,32,64], index: 10, kind: input, shape index: {}]
  %s11 = inlined_call_operand.vmem [shape: f32[2,1,64], index: 11, kind: input, shape index: {}]
  %s12 = inlined_call_operand.vmem [shape: bf16[2,64,32], index: 12, kind: input, shape index: {}]
  %s13 = inlined_call_operand.vmem [shape: f32[2,1,32], index: 13, kind: input, shape index: {}]
  %s14 = inlined_call_operand.vmem [shape: f32[2,1,32], index: 14, kind: input, shape index: {}]
  %s15 = inlined_call_operand.vmem [shape: f32[2,1,32], index: 15, kind: input, shape index: {}]
  %s16 = inlined_call_operand.hbm [shape: f32[2,8,32], index: 16, kind: output, shape index: {}]
  %s17 = sld [smem:[#allocation0]]
  $region105: #{text_feature_extract.1} parent=0
    _
  %s19 = ssub.s32 1, %s17
  %s20 = scalar_select 0, %s19, %s17
  $region1: #{text_feature_extract.1} parent=0
    #allocation4 [shape = 'u8[8192]{0}', space=vmem, size = 0x2000, scoped, tag = 'output window, operand 0']
    #allocation5 [shape = 's32[2]{0}', space=sflag, size = 0x8, scoped, tag = 'scoped memory for text_feature_extract.1']
    %21 = vsyncpa [#allocation5], 0
    %s22 = scalar_lea.sflag [#allocation5], 1
    %23 = vsyncpa %s22, 0
    loop: start=0, step=1, limit=6
    $region2: #{text_feature_extract.1} parent=1 // loop_pre_header
      _
    $region3: #{text_feature_extract.1} parent=1 // loop_header
      %s25 = sphi 0, %s29
      %p26 = scmp.ge.s32.totalorder %s25, 6
      %s32 = sphi 0, %s44
      %s33 = sphi 0, %s40
      %s34 = sphi 0, %s32
      %s35 = sphi 0, %s33
      %s36 = sphi 0, %s34
      %s37 = sphi 0, %s35
      %s47 = sphi 0, %s49
      %s50 = sphi 0, %s47
      %s51 = sphi 0, %s50
      %s67 = sphi 0, %s51
      %s73 = sphi 0, %s75
      %s76 = sphi 0, %s73
      %s77 = sphi 0, %s76
      %s93 = sphi 0, %s77
      %s97 = sphi 0, %s97
      %s99 = sphi 0, %s97
      %s100 = sphi 0, %s99
      %s114 = sphi 0, %s100
      %s118 = sphi 0, %s118
      %s120 = sphi 0, %s118
      %s121 = sphi 0, %s120
      %s135 = sphi 0, %s121
      %s141 = sphi 0, %s143
      %s144 = sphi 0, %s141
      %s145 = sphi 0, %s144
      %s161 = sphi 0, %s145
      %s167 = sphi 0, %s169
      %s170 = sphi 0, %s167
      %s171 = sphi 0, %s170
      %s187 = sphi 0, %s171
      %s193 = sphi 0, %s195
      %s196 = sphi 0, %s193
      %s197 = sphi 0, %s196
      %s213 = sphi 0, %s197
      %s219 = sphi 0, %s221
      %s222 = sphi 0, %s219
      %s223 = sphi 0, %s222
      %s239 = sphi 0, %s223
      %s245 = sphi 0, %s247
      %s248 = sphi 0, %s245
      %s249 = sphi 0, %s248
      %s265 = sphi 0, %s249
      %s271 = sphi 0, %s273
      %s274 = sphi 0, %s271
      %s275 = sphi 0, %s274
      %s291 = sphi 0, %s275
      %s297 = sphi 0, %s299
      %s300 = sphi 0, %s297
      %s301 = sphi 0, %s300
      %s317 = sphi 0, %s301
      %s323 = sphi 0, %s325
      %s326 = sphi 0, %s323
      %s327 = sphi 0, %s326
      %s343 = sphi 0, %s327
      %s349 = sphi 0, %s351
      %s352 = sphi 0, %s349
      %s353 = sphi 0, %s352
      %s369 = sphi 0, %s353
      %s375 = sphi 0, %s377
      %s378 = sphi 0, %s375
      %s379 = sphi 0, %s378
      %s395 = sphi 0, %s379
      %s401 = sphi 0, %s403
      %s404 = sphi 0, %s401
      %s405 = sphi 0, %s404
      %s421 = sphi 0, %s405
      %s427 = sphi 0, %s429
      %s430 = sphi 0, %s427
      %s431 = sphi 0, %s430
      %s447 = sphi 0, %s431
      %s453 = sphi 0, %s455
      %s456 = sphi 0, %s453
      %s457 = sphi 0, %s456
      %s473 = sphi 0, %s457
    $region4: #{text_feature_extract.1} parent=1 // loop_header_branch
      %28 = sbr.rel (%p26) target = $region8
    $region5: #{text_feature_extract.1} parent=1 // loop_body
      %s30 = ssub.s32 %s25, 1
      %s31 = ssub.s32 %s25, 2
      %s38 = sadd.s32 1, %s33
      %p39 = scmp.ge.s32.totalorder %s38, 2
      %s40 = scalar_select %p39, 0, %s38
      %s41 = sadd.s32 1, %s32
      %s42 = scalar_select %p39, %s41, %s32
      %p43 = scmp.ge.s32.totalorder %s42, 2
      %s44 = scalar_select %p43, 0, %s42
      %s45 = ssub.s32 %s32, %s44
      %p46 = scmp.eq.s32.totalorder %s45, 0
      %s48 = sadd.s32 %s47, 1
      %s49 = scalar_select %p46, %s47, %s48
      %p52 = pneg %p46
      %p53 = scmp.eq.s32.totalorder %s25, 3
      %p54 = por %p52, %p53
      %p55 = scmp.ne.s32.totalorder %s47, %s50
      %p56 = scmp.eq.s32.totalorder %s25, 0
      %p57 = por %p55, %p56
      %p58 = scmp.ne.s32.totalorder %s47, %s50
      %p59 = scmp.eq.s32.totalorder %s30, 3
      %p60 = por %p58, %p59
      %p61 = scmp.ne.s32.totalorder %s50, %s51
      %p62 = scmp.eq.s32.totalorder %s30, 0
      %p63 = por %p61, %p62
      %p64 = scmp.ne.s32.totalorder %s50, %s51
      %p65 = scmp.eq.s32.totalorder %s31, 3
      %p66 = por %p64, %p65
      %p68 = scmp.ne.s32.totalorder %s51, %s67
      %p69 = scmp.eq.s32.totalorder %s31, 0
      %p70 = por %p68, %p69
      %s71 = ssub.s32 %s32, %s44
      %p72 = scmp.eq.s32.totalorder %s71, 0
      %s74 = sadd.s32 %s73, 1
      %s75 = scalar_select %p72, %s73, %s74
      %p78 = pneg %p72
      %p79 = scmp.eq.s32.totalorder %s25, 3
      %p80 = por %p78, %p79
      %p81 = scmp.ne.s32.totalorder %s73, %s76
      %p82 = scmp.eq.s32.totalorder %s25, 0
      %p83 = por %p81, %p82
      %p84 = scmp.ne.s32.totalorder %s73, %s76
      %p85 = scmp.eq.s32.totalorder %s30, 3
      %p86 = por %p84, %p85
      %p87 = scmp.ne.s32.totalorder %s76, %s77
      %p88 = scmp.eq.s32.totalorder %s30, 0
      %p89 = por %p87, %p88
      %p90 = scmp.ne.s32.totalorder %s76, %s77
      %p91 = scmp.eq.s32.totalorder %s31, 3
      %p92 = por %p90, %p91
      %p94 = scmp.ne.s32.totalorder %s77, %s93
      %p95 = scmp.eq.s32.totalorder %s31, 0
      %p96 = por %p94, %p95
      %s98 = sadd.s32 %s97, 1
      %p101 = scmp.eq.s32.totalorder %s25, 3
      %p102 = scmp.ne.s32.totalorder %s97, %s99
      %p103 = scmp.eq.s32.totalorder %s25, 0
      %p104 = por %p102, %p103
      %p105 = scmp.ne.s32.totalorder %s97, %s99
      %p106 = scmp.eq.s32.totalorder %s30, 3
      %p107 = por %p105, %p106
      %p108 = scmp.ne.s32.totalorder %s99, %s100
      %p109 = scmp.eq.s32.totalorder %s30, 0
      %p110 = por %p108, %p109
      %p111 = scmp.ne.s32.totalorder %s99, %s100
      %p112 = scmp.eq.s32.totalorder %s31, 3
      %p113 = por %p111, %p112
      %p115 = scmp.ne.s32.totalorder %s100, %s114
      %p116 = scmp.eq.s32.totalorder %s31, 0
      %p117 = por %p115, %p116
      %s119 = sadd.s32 %s118, 1
      %p122 = scmp.eq.s32.totalorder %s25, 3
      %p123 = scmp.ne.s32.totalorder %s118, %s120
      %p124 = scmp.eq.s32.totalorder %s25, 0
      %p125 = por %p123, %p124
      %p126 = scmp.ne.s32.totalorder %s118, %s120
      %p127 = scmp.eq.s32.totalorder %s30, 3
      %p128 = por %p126, %p127
      %p129 = scmp.ne.s32.totalorder %s120, %s121
      %p130 = scmp.eq.s32.totalorder %s30, 0
      %p131 = por %p129, %p130
      %p132 = scmp.ne.s32.totalorder %s120, %s121
      %p133 = scmp.eq.s32.totalorder %s31, 3
      %p134 = por %p132, %p133
      %p136 = scmp.ne.s32.totalorder %s121, %s135
      %p137 = scmp.eq.s32.totalorder %s31, 0
      %p138 = por %p136, %p137
      %s139 = ssub.s32 %s33, %s40
      %p140 = scmp.eq.s32.totalorder %s139, 0
      %s142 = sadd.s32 %s141, 1
      %s143 = scalar_select %p140, %s141, %s142
      %p146 = pneg %p140
      %p147 = scmp.eq.s32.totalorder %s25, 3
      %p148 = por %p146, %p147
      %p149 = scmp.ne.s32.totalorder %s141, %s144
      %p150 = scmp.eq.s32.totalorder %s25, 0
      %p151 = por %p149, %p150
      %p152 = scmp.ne.s32.totalorder %s141, %s144
      %p153 = scmp.eq.s32.totalorder %s30, 3
      %p154 = por %p152, %p153
      %p155 = scmp.ne.s32.totalorder %s144, %s145
      %p156 = scmp.eq.s32.totalorder %s30, 0
      %p157 = por %p155, %p156
      %p158 = scmp.ne.s32.totalorder %s144, %s145
      %p159 = scmp.eq.s32.totalorder %s31, 3
      %p160 = por %p158, %p159
      %p162 = scmp.ne.s32.totalorder %s145, %s161
      %p163 = scmp.eq.s32.totalorder %s31, 0
      %p164 = por %p162, %p163
      %s165 = ssub.s32 %s33, %s40
      %p166 = scmp.eq.s32.totalorder %s165, 0
      %s168 = sadd.s32 %s167, 1
      %s169 = scalar_select %p166, %s167, %s168
      %p172 = pneg %p166
      %p173 = scmp.eq.s32.totalorder %s25, 3
      %p174 = por %p172, %p173
      %p175 = scmp.ne.s32.totalorder %s167, %s170
      %p176 = scmp.eq.s32.totalorder %s25, 0
      %p177 = por %p175, %p176
      %p178 = scmp.ne.s32.totalorder %s167, %s170
      %p179 = scmp.eq.s32.totalorder %s30, 3
      %p180 = por %p178, %p179
      %p181 = scmp.ne.s32.totalorder %s170, %s171
      %p182 = scmp.eq.s32.totalorder %s30, 0
      %p183 = por %p181, %p182
      %p184 = scmp.ne.s32.totalorder %s170, %s171
      %p185 = scmp.eq.s32.totalorder %s31, 3
      %p186 = por %p184, %p185
      %p188 = scmp.ne.s32.totalorder %s171, %s187
      %p189 = scmp.eq.s32.totalorder %s31, 0
      %p190 = por %p188, %p189
      %s191 = ssub.s32 %s33, %s40
      %p192 = scmp.eq.s32.totalorder %s191, 0
      %s194 = sadd.s32 %s193, 1
      %s195 = scalar_select %p192, %s193, %s194
      %p198 = pneg %p192
      %p199 = scmp.eq.s32.totalorder %s25, 3
      %p200 = por %p198, %p199
      %p201 = scmp.ne.s32.totalorder %s193, %s196
      %p202 = scmp.eq.s32.totalorder %s25, 0
      %p203 = por %p201, %p202
      %p204 = scmp.ne.s32.totalorder %s193, %s196
      %p205 = scmp.eq.s32.totalorder %s30, 3
      %p206 = por %p204, %p205
      %p207 = scmp.ne.s32.totalorder %s196, %s197
      %p208 = scmp.eq.s32.totalorder %s30, 0
      %p209 = por %p207, %p208
      %p210 = scmp.ne.s32.totalorder %s196, %s197
      %p211 = scmp.eq.s32.totalorder %s31, 3
      %p212 = por %p210, %p211
      %p214 = scmp.ne.s32.totalorder %s197, %s213
      %p215 = scmp.eq.s32.totalorder %s31, 0
      %p216 = por %p214, %p215
      %s217 = ssub.s32 %s33, %s40
      %p218 = scmp.eq.s32.totalorder %s217, 0
      %s220 = sadd.s32 %s219, 1
      %s221 = scalar_select %p218, %s219, %s220
      %p224 = pneg %p218
      %p225 = scmp.eq.s32.totalorder %s25, 3
      %p226 = por %p224, %p225
      %p227 = scmp.ne.s32.totalorder %s219, %s222
      %p228 = scmp.eq.s32.totalorder %s25, 0
      %p229 = por %p227, %p228
      %p230 = scmp.ne.s32.totalorder %s219, %s222
      %p231 = scmp.eq.s32.totalorder %s30, 3
      %p232 = por %p230, %p231
      %p233 = scmp.ne.s32.totalorder %s222, %s223
      %p234 = scmp.eq.s32.totalorder %s30, 0
      %p235 = por %p233, %p234
      %p236 = scmp.ne.s32.totalorder %s222, %s223
      %p237 = scmp.eq.s32.totalorder %s31, 3
      %p238 = por %p236, %p237
      %p240 = scmp.ne.s32.totalorder %s223, %s239
      %p241 = scmp.eq.s32.totalorder %s31, 0
      %p242 = por %p240, %p241
      %s243 = ssub.s32 %s33, %s40
      %p244 = scmp.eq.s32.totalorder %s243, 0
      %s246 = sadd.s32 %s245, 1
      %s247 = scalar_select %p244, %s245, %s246
      %p250 = pneg %p244
      %p251 = scmp.eq.s32.totalorder %s25, 3
      %p252 = por %p250, %p251
      %p253 = scmp.ne.s32.totalorder %s245, %s248
      %p254 = scmp.eq.s32.totalorder %s25, 0
      %p255 = por %p253, %p254
      %p256 = scmp.ne.s32.totalorder %s245, %s248
      %p257 = scmp.eq.s32.totalorder %s30, 3
      %p258 = por %p256, %p257
      %p259 = scmp.ne.s32.totalorder %s248, %s249
      %p260 = scmp.eq.s32.totalorder %s30, 0
      %p261 = por %p259, %p260
      %p262 = scmp.ne.s32.totalorder %s248, %s249
      %p263 = scmp.eq.s32.totalorder %s31, 3
      %p264 = por %p262, %p263
      %p266 = scmp.ne.s32.totalorder %s249, %s265
      %p267 = scmp.eq.s32.totalorder %s31, 0
      %p268 = por %p266, %p267
      %s269 = ssub.s32 %s33, %s40
      %p270 = scmp.eq.s32.totalorder %s269, 0
      %s272 = sadd.s32 %s271, 1
      %s273 = scalar_select %p270, %s271, %s272
      %p276 = pneg %p270
      %p277 = scmp.eq.s32.totalorder %s25, 3
      %p278 = por %p276, %p277
      %p279 = scmp.ne.s32.totalorder %s271, %s274
      %p280 = scmp.eq.s32.totalorder %s25, 0
      %p281 = por %p279, %p280
      %p282 = scmp.ne.s32.totalorder %s271, %s274
      %p283 = scmp.eq.s32.totalorder %s30, 3
      %p284 = por %p282, %p283
      %p285 = scmp.ne.s32.totalorder %s274, %s275
      %p286 = scmp.eq.s32.totalorder %s30, 0
      %p287 = por %p285, %p286
      %p288 = scmp.ne.s32.totalorder %s274, %s275
      %p289 = scmp.eq.s32.totalorder %s31, 3
      %p290 = por %p288, %p289
      %p292 = scmp.ne.s32.totalorder %s275, %s291
      %p293 = scmp.eq.s32.totalorder %s31, 0
      %p294 = por %p292, %p293
      %s295 = ssub.s32 %s33, %s40
      %p296 = scmp.eq.s32.totalorder %s295, 0
      %s298 = sadd.s32 %s297, 1
      %s299 = scalar_select %p296, %s297, %s298
      %p302 = pneg %p296
      %p303 = scmp.eq.s32.totalorder %s25, 3
      %p304 = por %p302, %p303
      %p305 = scmp.ne.s32.totalorder %s297, %s300
      %p306 = scmp.eq.s32.totalorder %s25, 0
      %p307 = por %p305, %p306
      %p308 = scmp.ne.s32.totalorder %s297, %s300
      %p309 = scmp.eq.s32.totalorder %s30, 3
      %p310 = por %p308, %p309
      %p311 = scmp.ne.s32.totalorder %s300, %s301
      %p312 = scmp.eq.s32.totalorder %s30, 0
      %p313 = por %p311, %p312
      %p314 = scmp.ne.s32.totalorder %s300, %s301
      %p315 = scmp.eq.s32.totalorder %s31, 3
      %p316 = por %p314, %p315
      %p318 = scmp.ne.s32.totalorder %s301, %s317
      %p319 = scmp.eq.s32.totalorder %s31, 0
      %p320 = por %p318, %p319
      %s321 = ssub.s32 %s33, %s40
      %p322 = scmp.eq.s32.totalorder %s321, 0
      %s324 = sadd.s32 %s323, 1
      %s325 = scalar_select %p322, %s323, %s324
      %p328 = pneg %p322
      %p329 = scmp.eq.s32.totalorder %s25, 3
      %p330 = por %p328, %p329
      %p331 = scmp.ne.s32.totalorder %s323, %s326
      %p332 = scmp.eq.s32.totalorder %s25, 0
      %p333 = por %p331, %p332
      %p334 = scmp.ne.s32.totalorder %s323, %s326
      %p335 = scmp.eq.s32.totalorder %s30, 3
      %p336 = por %p334, %p335
      %p337 = scmp.ne.s32.totalorder %s326, %s327
      %p338 = scmp.eq.s32.totalorder %s30, 0
      %p339 = por %p337, %p338
      %p340 = scmp.ne.s32.totalorder %s326, %s327
      %p341 = scmp.eq.s32.totalorder %s31, 3
      %p342 = por %p340, %p341
      %p344 = scmp.ne.s32.totalorder %s327, %s343
      %p345 = scmp.eq.s32.totalorder %s31, 0
      %p346 = por %p344, %p345
      %s347 = ssub.s32 %s33, %s40
      %p348 = scmp.eq.s32.totalorder %s347, 0
      %s350 = sadd.s32 %s349, 1
      %s351 = scalar_select %p348, %s349, %s350
      %p354 = pneg %p348
      %p355 = scmp.eq.s32.totalorder %s25, 3
      %p356 = por %p354, %p355
      %p357 = scmp.ne.s32.totalorder %s349, %s352
      %p358 = scmp.eq.s32.totalorder %s25, 0
      %p359 = por %p357, %p358
      %p360 = scmp.ne.s32.totalorder %s349, %s352
      %p361 = scmp.eq.s32.totalorder %s30, 3
      %p362 = por %p360, %p361
      %p363 = scmp.ne.s32.totalorder %s352, %s353
      %p364 = scmp.eq.s32.totalorder %s30, 0
      %p365 = por %p363, %p364
      %p366 = scmp.ne.s32.totalorder %s352, %s353
      %p367 = scmp.eq.s32.totalorder %s31, 3
      %p368 = por %p366, %p367
      %p370 = scmp.ne.s32.totalorder %s353, %s369
      %p371 = scmp.eq.s32.totalorder %s31, 0
      %p372 = por %p370, %p371
      %s373 = ssub.s32 %s33, %s40
      %p374 = scmp.eq.s32.totalorder %s373, 0
      %s376 = sadd.s32 %s375, 1
      %s377 = scalar_select %p374, %s375, %s376
      %p380 = pneg %p374
      %p381 = scmp.eq.s32.totalorder %s25, 3
      %p382 = por %p380, %p381
      %p383 = scmp.ne.s32.totalorder %s375, %s378
      %p384 = scmp.eq.s32.totalorder %s25, 0
      %p385 = por %p383, %p384
      %p386 = scmp.ne.s32.totalorder %s375, %s378
      %p387 = scmp.eq.s32.totalorder %s30, 3
      %p388 = por %p386, %p387
      %p389 = scmp.ne.s32.totalorder %s378, %s379
      %p390 = scmp.eq.s32.totalorder %s30, 0
      %p391 = por %p389, %p390
      %p392 = scmp.ne.s32.totalorder %s378, %s379
      %p393 = scmp.eq.s32.totalorder %s31, 3
      %p394 = por %p392, %p393
      %p396 = scmp.ne.s32.totalorder %s379, %s395
      %p397 = scmp.eq.s32.totalorder %s31, 0
      %p398 = por %p396, %p397
      %s399 = ssub.s32 %s33, %s40
      %p400 = scmp.eq.s32.totalorder %s399, 0
      %s402 = sadd.s32 %s401, 1
      %s403 = scalar_select %p400, %s401, %s402
      %p406 = pneg %p400
      %p407 = scmp.eq.s32.totalorder %s25, 3
      %p408 = por %p406, %p407
      %p409 = scmp.ne.s32.totalorder %s401, %s404
      %p410 = scmp.eq.s32.totalorder %s25, 0
      %p411 = por %p409, %p410
      %p412 = scmp.ne.s32.totalorder %s401, %s404
      %p413 = scmp.eq.s32.totalorder %s30, 3
      %p414 = por %p412, %p413
      %p415 = scmp.ne.s32.totalorder %s404, %s405
      %p416 = scmp.eq.s32.totalorder %s30, 0
      %p417 = por %p415, %p416
      %p418 = scmp.ne.s32.totalorder %s404, %s405
      %p419 = scmp.eq.s32.totalorder %s31, 3
      %p420 = por %p418, %p419
      %p422 = scmp.ne.s32.totalorder %s405, %s421
      %p423 = scmp.eq.s32.totalorder %s31, 0
      %p424 = por %p422, %p423
      %s425 = ssub.s32 %s33, %s40
      %p426 = scmp.eq.s32.totalorder %s425, 0
      %s428 = sadd.s32 %s427, 1
      %s429 = scalar_select %p426, %s427, %s428
      %p432 = pneg %p426
      %p433 = scmp.eq.s32.totalorder %s25, 3
      %p434 = por %p432, %p433
      %p435 = scmp.ne.s32.totalorder %s427, %s430
      %p436 = scmp.eq.s32.totalorder %s25, 0
      %p437 = por %p435, %p436
      %p438 = scmp.ne.s32.totalorder %s427, %s430
      %p439 = scmp.eq.s32.totalorder %s30, 3
      %p440 = por %p438, %p439
      %p441 = scmp.ne.s32.totalorder %s430, %s431
      %p442 = scmp.eq.s32.totalorder %s30, 0
      %p443 = por %p441, %p442
      %p444 = scmp.ne.s32.totalorder %s430, %s431
      %p445 = scmp.eq.s32.totalorder %s31, 3
      %p446 = por %p444, %p445
      %p448 = scmp.ne.s32.totalorder %s431, %s447
      %p449 = scmp.eq.s32.totalorder %s31, 0
      %p450 = por %p448, %p449
      %s451 = ssub.s32 %s32, %s44
      %p452 = scmp.eq.s32.totalorder %s451, 0
      %s454 = sadd.s32 %s453, 1
      %s455 = scalar_select %p452, %s453, %s454
      %p458 = pneg %p452
      %p459 = scmp.eq.s32.totalorder %s25, 3
      %p460 = por %p458, %p459
      %p461 = scmp.ne.s32.totalorder %s453, %s456
      %p462 = scmp.eq.s32.totalorder %s25, 0
      %p463 = por %p461, %p462
      %p464 = scmp.ne.s32.totalorder %s453, %s456
      %p465 = scmp.eq.s32.totalorder %s30, 3
      %p466 = por %p464, %p465
      %p467 = scmp.ne.s32.totalorder %s456, %s457
      %p468 = scmp.eq.s32.totalorder %s30, 0
      %p469 = por %p467, %p468
      %p470 = scmp.ne.s32.totalorder %s456, %s457
      %p471 = scmp.eq.s32.totalorder %s31, 3
      %p472 = por %p470, %p471
      %p474 = scmp.ne.s32.totalorder %s457, %s473
      %p475 = scmp.eq.s32.totalorder %s31, 0
      %p476 = por %p474, %p475
      %p477 = scmp.le.s32.totalorder 1, %s25
      %p478 = scmp.lt.s32.totalorder %s25, 5
      %p479 = pnand %p477, %p478
      %p480 = pneg %p479
      // Predicated region
      $region9: #{text_feature_extract.1} parent=5 // pred_check
        _
      $region10: #{text_feature_extract.1} parent=5 // pred_check_branch
        %482 = sbr.rel (%p479) target = $region12
      $region11: #{text_feature_extract.1} parent=5 // pred_region
        %s483 = ssub.s32 %s25, 1
        // Predicated region
        $region13: #{text_feature_extract.1} parent=11 // pred_check
          %p484 = pneg %p110
        $region14: #{text_feature_extract.1} parent=11 // pred_check_branch
          %486 = sbr.rel (%p484) target = $region16
        $region15: #{text_feature_extract.1} parent=11 // pred_region
          _
        $region16: #{text_feature_extract.1} parent=11 // pred_fallthru
          _
        // Predicated region
        $region17: #{text_feature_extract.1} parent=11 // pred_check
          %p487 = pneg %p131
        $region18: #{text_feature_extract.1} parent=11 // pred_check_branch
          %489 = sbr.rel (%p487) target = $region20
        $region19: #{text_feature_extract.1} parent=11 // pred_region
          _
        $region20: #{text_feature_extract.1} parent=11 // pred_fallthru
          _
      $region12: #{text_feature_extract.1} parent=5 // pred_fallthru
        _
      %p490 = scmp.lt.s32.totalorder %s25, 4
      // Predicated region
      $region21: #{text_feature_extract.1} parent=5 // pred_check
        %p491 = pneg %p490
      $region22: #{text_feature_extract.1} parent=5 // pred_check_branch
        %493 = sbr.rel (%p491) target = $region24
      $region23: #{text_feature_extract.1} parent=5 // pred_region
        // Predicated region
        $region25: #{text_feature_extract.1} parent=23 // pred_check
          %p494 = pneg %p57
        $region26: #{text_feature_extract.1} parent=23 // pred_check_branch
          %496 = sbr.rel (%p494) target = $region28
        $region27: #{text_feature_extract.1} parent=23 // pred_region
          %p497 = scmp.lt.s32.totalorder %s32, 1
          %s498 = scalar_select %p497, %s32, 1
          %s499 = smul.addr %s498, 8
          %s500 = scalar_lea.vmem %s0, %s499
        $region28: #{text_feature_extract.1} parent=23 // pred_fallthru
          _
        // Predicated region
        $region29: #{text_feature_extract.1} parent=23 // pred_check
          %p501 = pneg %p83
        $region30: #{text_feature_extract.1} parent=23 // pred_check_branch
          %503 = sbr.rel (%p501) target = $region32
        $region31: #{text_feature_extract.1} parent=23 // pred_region
          %p504 = scmp.lt.s32.totalorder %s32, 1
          %s505 = scalar_select %p504, %s32, 1
          %s506 = scalar_lea.vmem %s1, %s505
        $region32: #{text_feature_extract.1} parent=23 // pred_fallthru
          _
        // Predicated region
        $region33: #{text_feature_extract.1} parent=23 // pred_check
          %p507 = pneg %p151
        $region34: #{text_feature_extract.1} parent=23 // pred_check_branch
          %509 = sbr.rel (%p507) target = $region36
        $region35: #{text_feature_extract.1} parent=23 // pred_region
          %p510 = scmp.lt.s32.totalorder %s33, 1
          %s511 = scalar_select %p510, %s33, 1
          %s512 = smul.addr %s511, 4
          %s513 = smul.addr %s512, 4
          %s514 = scalar_lea.vmem %s4, %s513
        $region36: #{text_feature_extract.1} parent=23 // pred_fallthru
          _
        // Predicated region
        $region37: #{text_feature_extract.1} parent=23 // pred_check
          %p515 = pneg %p177
        $region38: #{text_feature_extract.1} parent=23 // pred_check_branch
          %517 = sbr.rel (%p515) target = $region40
        $region39: #{text_feature_extract.1} parent=23 // pred_region
          %p518 = scmp.lt.s32.totalorder %s33, 1
          %s519 = scalar_select %p518, %s33, 1
          %s520 = scalar_lea.vmem %s5, %s519
        $region40: #{text_feature_extract.1} parent=23 // pred_fallthru
          _
        // Predicated region
        $region41: #{text_feature_extract.1} parent=23 // pred_check
          %p521 = pneg %p203
        $region42: #{text_feature_extract.1} parent=23 // pred_check_branch
          %523 = sbr.rel (%p521) target = $region44
        $region43: #{text_feature_extract.1} parent=23 // pred_region
          %p524 = scmp.lt.s32.totalorder %s33, 1
          %s525 = scalar_select %p524, %s33, 1
          %s526 = smul.addr %s525, 4
          %s527 = smul.addr %s526, 4
          %s528 = scalar_lea.vmem %s6, %s527
        $region44: #{text_feature_extract.1} parent=23 // pred_fallthru
          _
        // Predicated region
        $region45: #{text_feature_extract.1} parent=23 // pred_check
          %p529 = pneg %p229
        $region46: #{text_feature_extract.1} parent=23 // pred_check_branch
          %531 = sbr.rel (%p529) target = $region48
        $region47: #{text_feature_extract.1} parent=23 // pred_region
          %p532 = scmp.lt.s32.totalorder %s33, 1
          %s533 = scalar_select %p532, %s33, 1
          %s534 = scalar_lea.vmem %s7, %s533
        $region48: #{text_feature_extract.1} parent=23 // pred_fallthru
          _
        // Predicated region
        $region49: #{text_feature_extract.1} parent=23 // pred_check
          %p535 = pneg %p255
        $region50: #{text_feature_extract.1} parent=23 // pred_check_branch
          %537 = sbr.rel (%p535) target = $region52
        $region51: #{text_feature_extract.1} parent=23 // pred_region
          %p538 = scmp.lt.s32.totalorder %s33, 1
          %s539 = scalar_select %p538, %s33, 1
          %s540 = scalar_lea.vmem %s8, %s539
        $region52: #{text_feature_extract.1} parent=23 // pred_fallthru
          _
        // Predicated region
        $region53: #{text_feature_extract.1} parent=23 // pred_check
          %p541 = pneg %p281
        $region54: #{text_feature_extract.1} parent=23 // pred_check_branch
          %543 = sbr.rel (%p541) target = $region56
        $region55: #{text_feature_extract.1} parent=23 // pred_region
          %p544 = scmp.lt.s32.totalorder %s33, 1
          %s545 = scalar_select %p544, %s33, 1
          %s546 = scalar_lea.vmem %s9, %s545
        $region56: #{text_feature_extract.1} parent=23 // pred_fallthru
          _
        // Predicated region
        $region57: #{text_feature_extract.1} parent=23 // pred_check
          %p547 = pneg %p307
        $region58: #{text_feature_extract.1} parent=23 // pred_check_branch
          %549 = sbr.rel (%p547) target = $region60
        $region59: #{text_feature_extract.1} parent=23 // pred_region
          %p550 = scmp.lt.s32.totalorder %s33, 1
          %s551 = scalar_select %p550, %s33, 1
          %s552 = smul.addr %s551, 4
          %s553 = smul.addr %s552, 4
          %s554 = scalar_lea.vmem %s10, %s553
        $region60: #{text_feature_extract.1} parent=23 // pred_fallthru
          _
        // Predicated region
        $region61: #{text_feature_extract.1} parent=23 // pred_check
          %p555 = pneg %p333
        $region62: #{text_feature_extract.1} parent=23 // pred_check_branch
          %557 = sbr.rel (%p555) target = $region64
        $region63: #{text_feature_extract.1} parent=23 // pred_region
          %p558 = scmp.lt.s32.totalorder %s33, 1
          %s559 = scalar_select %p558, %s33, 1
          %s560 = scalar_lea.vmem %s11, %s559
        $region64: #{text_feature_extract.1} parent=23 // pred_fallthru
          _
        // Predicated region
        $region65: #{text_feature_extract.1} parent=23 // pred_check
          %p561 = pneg %p359
        $region66: #{text_feature_extract.1} parent=23 // pred_check_branch
          %563 = sbr.rel (%p561) target = $region68
        $region67: #{text_feature_extract.1} parent=23 // pred_region
          %p564 = scmp.lt.s32.totalorder %s33, 1
          %s565 = scalar_select %p564, %s33, 1
          %s566 = smul.addr %s565, 8
          %s567 = smul.addr %s566, 4
          %s568 = scalar_lea.vmem %s12, %s567
        $region68: #{text_feature_extract.1} parent=23 // pred_fallthru
          _
        // Predicated region
        $region69: #{text_feature_extract.1} parent=23 // pred_check
          %p569 = pneg %p385
        $region70: #{text_feature_extract.1} parent=23 // pred_check_branch
          %571 = sbr.rel (%p569) target = $region72
        $region71: #{text_feature_extract.1} parent=23 // pred_region
          %p572 = scmp.lt.s32.totalorder %s33, 1
          %s573 = scalar_select %p572, %s33, 1
          %s574 = scalar_lea.vmem %s13, %s573
        $region72: #{text_feature_extract.1} parent=23 // pred_fallthru
          _
        // Predicated region
        $region73: #{text_feature_extract.1} parent=23 // pred_check
          %p575 = pneg %p411
        $region74: #{text_feature_extract.1} parent=23 // pred_check_branch
          %577 = sbr.rel (%p575) target = $region76
        $region75: #{text_feature_extract.1} parent=23 // pred_region
          %p578 = scmp.lt.s32.totalorder %s33, 1
          %s579 = scalar_select %p578, %s33, 1
          %s580 = scalar_lea.vmem %s14, %s579
        $region76: #{text_feature_extract.1} parent=23 // pred_fallthru
          _
        // Predicated region
        $region77: #{text_feature_extract.1} parent=23 // pred_check
          %p581 = pneg %p437
        $region78: #{text_feature_extract.1} parent=23 // pred_check_branch
          %583 = sbr.rel (%p581) target = $region80
        $region79: #{text_feature_extract.1} parent=23 // pred_region
          %p584 = scmp.lt.s32.totalorder %s33, 1
          %s585 = scalar_select %p584, %s33, 1
          %s586 = scalar_lea.vmem %s15, %s585
        $region80: #{text_feature_extract.1} parent=23 // pred_fallthru
          _
      $region24: #{text_feature_extract.1} parent=5 // pred_fallthru
        _
      %p587 = scmp.le.s32.totalorder 1, %s25
      %p588 = scmp.lt.s32.totalorder %s25, 5
      %p589 = pnand %p587, %p588
      %p590 = pneg %p589
      // Predicated region
      $region81: #{text_feature_extract.1} parent=5 // pred_check
        _
      $region82: #{text_feature_extract.1} parent=5 // pred_check_branch
        %592 = sbr.rel (%p589) target = $region84
      $region83: #{text_feature_extract.1} parent=5 // pred_region
        %s593 = ssub.s32 %s25, 1
        %p594 = scmp.lt.s32.totalorder %s34, 1
        %s595 = scalar_select %p594, %s34, 1
        %s596 = smul.addr %s595, 8
        %s597 = scalar_lea.vmem %s0, %s596
        %p598 = pneg %p63
        %p599 = pneg %p60
        %p600 = scmp.lt.s32.totalorder %s34, 1
        %s601 = scalar_select %p600, %s34, 1
        %s602 = scalar_lea.vmem %s1, %s601
        %p603 = pneg %p89
        %p604 = pneg %p86
        %p605 = pneg %p110
        %p606 = pneg %p107
        %p607 = pneg %p131
        %p608 = pneg %p128
        %p609 = scmp.lt.s32.totalorder %s35, 1
        %s610 = scalar_select %p609, %s35, 1
        %s611 = smul.addr %s610, 4
        %s612 = smul.addr %s611, 4
        %s613 = scalar_lea.vmem %s4, %s612
        %p614 = pneg %p157
        %p615 = pneg %p154
        %p616 = scmp.lt.s32.totalorder %s35, 1
        %s617 = scalar_select %p616, %s35, 1
        %s618 = scalar_lea.vmem %s5, %s617
        %p619 = pneg %p183
        %p620 = pneg %p180
        %p621 = scmp.lt.s32.totalorder %s35, 1
        %s622 = scalar_select %p621, %s35, 1
        %s623 = smul.addr %s622, 4
        %s624 = smul.addr %s623, 4
        %s625 = scalar_lea.vmem %s6, %s624
        %p626 = pneg %p209
        %p627 = pneg %p206
        %p628 = scmp.lt.s32.totalorder %s35, 1
        %s629 = scalar_select %p628, %s35, 1
        %s630 = scalar_lea.vmem %s7, %s629
        %p631 = pneg %p235
        %p632 = pneg %p232
        %p633 = scmp.lt.s32.totalorder %s35, 1
        %s634 = scalar_select %p633, %s35, 1
        %s635 = scalar_lea.vmem %s8, %s634
        %p636 = pneg %p261
        %p637 = pneg %p258
        %p638 = scmp.lt.s32.totalorder %s35, 1
        %s639 = scalar_select %p638, %s35, 1
        %s640 = scalar_lea.vmem %s9, %s639
        %p641 = pneg %p287
        %p642 = pneg %p284
        %p643 = scmp.lt.s32.totalorder %s35, 1
        %s644 = scalar_select %p643, %s35, 1
        %s645 = smul.addr %s644, 4
        %s646 = smul.addr %s645, 4
        %s647 = scalar_lea.vmem %s10, %s646
        %p648 = pneg %p313
        %p649 = pneg %p310
        %p650 = scmp.lt.s32.totalorder %s35, 1
        %s651 = scalar_select %p650, %s35, 1
        %s652 = scalar_lea.vmem %s11, %s651
        %p653 = pneg %p339
        %p654 = pneg %p336
        %p655 = scmp.lt.s32.totalorder %s35, 1
        %s656 = scalar_select %p655, %s35, 1
        %s657 = smul.addr %s656, 8
        %s658 = smul.addr %s657, 4
        %s659 = scalar_lea.vmem %s12, %s658
        %p660 = pneg %p365
        %p661 = pneg %p362
        %p662 = scmp.lt.s32.totalorder %s35, 1
        %s663 = scalar_select %p662, %s35, 1
        %s664 = scalar_lea.vmem %s13, %s663
        %p665 = pneg %p391
        %p666 = pneg %p388
        %p667 = scmp.lt.s32.totalorder %s35, 1
        %s668 = scalar_select %p667, %s35, 1
        %s669 = scalar_lea.vmem %s14, %s668
        %p670 = pneg %p417
        %p671 = pneg %p414
        %p672 = scmp.lt.s32.totalorder %s35, 1
        %s673 = scalar_select %p672, %s35, 1
        %s674 = scalar_lea.vmem %s15, %s673
        %p675 = pneg %p443
        %p676 = pneg %p440
        %p677 = pneg %p469
        %p678 = pneg %p466
        %s679 = sand.u32 %s456, 1
        %s680 = scalar_lea.sflag [#allocation5], %s679
        %s681 = sand.u32 %s456, 1
        %s682 = smul.addr %s681, 8
        %s683 = scalar_lea.vmem [#allocation4], %s682
        %p684 = scmp.lt.s32.totalorder %s34, 1
        %s685 = scalar_select %p684, %s34, 1
        %s686 = smul.addr %s685, 8
        %s687 = scalar_lea.vmem %s0, %s686
        %p688 = scmp.lt.s32.totalorder %s34, 1
        %s689 = scalar_select %p688, %s34, 1
        %s690 = scalar_lea.vmem %s1, %s689
        %p691 = scmp.lt.s32.totalorder %s35, 1
        %s692 = scalar_select %p691, %s35, 1
        %s693 = smul.addr %s692, 4
        %s694 = smul.addr %s693, 4
        %s695 = scalar_lea.vmem %s4, %s694
        %p696 = scmp.lt.s32.totalorder %s35, 1
        %s697 = scalar_select %p696, %s35, 1
        %s698 = scalar_lea.vmem %s5, %s697
        %p699 = scmp.lt.s32.totalorder %s35, 1
        %s700 = scalar_select %p699, %s35, 1
        %s701 = smul.addr %s700, 4
        %s702 = smul.addr %s701, 4
        %s703 = scalar_lea.vmem %s6, %s702
        %p704 = scmp.lt.s32.totalorder %s35, 1
        %s705 = scalar_select %p704, %s35, 1
        %s706 = scalar_lea.vmem %s7, %s705
        %p707 = scmp.lt.s32.totalorder %s35, 1
        %s708 = scalar_select %p707, %s35, 1
        %s709 = scalar_lea.vmem %s8, %s708
        %p710 = scmp.lt.s32.totalorder %s35, 1
        %s711 = scalar_select %p710, %s35, 1
        %s712 = scalar_lea.vmem %s9, %s711
        %p713 = scmp.lt.s32.totalorder %s35, 1
        %s714 = scalar_select %p713, %s35, 1
        %s715 = smul.addr %s714, 4
        %s716 = smul.addr %s715, 4
        %s717 = scalar_lea.vmem %s10, %s716
        %p718 = scmp.lt.s32.totalorder %s35, 1
        %s719 = scalar_select %p718, %s35, 1
        %s720 = scalar_lea.vmem %s11, %s719
        %p721 = scmp.lt.s32.totalorder %s35, 1
        %s722 = scalar_select %p721, %s35, 1
        %s723 = smul.addr %s722, 8
        %s724 = smul.addr %s723, 4
        %s725 = scalar_lea.vmem %s12, %s724
        %p726 = scmp.lt.s32.totalorder %s35, 1
        %s727 = scalar_select %p726, %s35, 1
        %s728 = scalar_lea.vmem %s13, %s727
        %p729 = scmp.lt.s32.totalorder %s35, 1
        %s730 = scalar_select %p729, %s35, 1
        %s731 = scalar_lea.vmem %s14, %s730
        %p732 = scmp.lt.s32.totalorder %s35, 1
        %s733 = scalar_select %p732, %s35, 1
        %s734 = scalar_lea.vmem %s15, %s733
        %p736 = scmp.eq.s32.totalorder %s35, 0
        // Predicated region
        $region85: #{text_feature_extract.1} parent=83 // pred_check
          %p737 = pneg %p736
        $region86: #{text_feature_extract.1} parent=83 // pred_check_branch
          %739 = sbr.rel (%p737) target = $region88
        $region87: #{text_feature_extract.1} parent=83 // pred_region
          %v740 = vld [vmem:[%s687] sm:$0xff]
          %v741 = vld [vmem:[%s2] sm:$0x1]
          %v742 = vld [vmem:[%s3] sm:$0x1]
          %vm743 = vcmask 261120
          %v744 = vsel %vm743, %v740, 0.0
          %745 = vadd.xlane.f32.xlu0 %v744
          %v746 = vpop.xlane.xlu0 %745
          %v747 = vrcp.pop 32.0
          %v748 = vmul.f32 %v746, %v747
          %v749 = vsub.f32 %v740, %v748
          %v750 = vmul.f32 %v749, %v749
          %v751 = vsel %vm743, %v750, 0.0
          %752 = vadd.xlane.f32.xlu0 %v751
          %v753 = vpop.xlane.xlu0 %752
          %v754 = vmul.f32 %v753, %v747
          %v755 = vadd.f32 %v754, 1e-12
          %v756 = vrsqrt.pop %v755
          %v757 = vmul.f32 %v749, %v756
          %v759 = vlaneseq
          %v760 = vshrl.u32 %v759, 7
          %v761 = vsub.s32 0, %v760
          %v762 = vrot.slane %v741, %v761
          %v764 = vmul.f32 %v757, %v762
          %v766 = vlaneseq
          %v767 = vshrl.u32 %v766, 7
          %v768 = vsub.s32 0, %v767
          %v769 = vrot.slane %v742, %v768
          %v771 = vadd.f32 %v764, %v769
          %772 = vst.msk [vmem:[#allocation2] sm:$0xff] %vm743, %v771
        $region88: #{text_feature_extract.1} parent=83 // pred_fallthru
          _
        %v773 = vld [vmem:[#allocation2] sm:$0xff]
        %v774 = vld [vmem:[%s690] sm:$0x1]
        %v775 = vpack.c.bf16 %v773, %v773
        %v776 = vld [vmem:[%s695] sm:$0xf]
        %v777 = vld [vmem:[%s695 + $0x4] sm:$0xf]
        %v778 = vld [vmem:[%s695 + $0x8] sm:$0xf]
        %v779 = vld [vmem:[%s695 + $0xc] sm:$0xf]
        %v780 = vld [vmem:[%s698] sm:$0x1]
        %v782 = vlaneseq
        %v783 = vshrl.u32 %v782, 7
        %v784 = vsub.s32 0, %v783
        %v785 = vrot.slane %v780, %v784
        %v791 = vunpack.c.l.b16 %v776
        %v792 = vunpack.c.l.b16 %v777
        %v793 = vunpack.c.l.b16 %v778
        %v794 = vunpack.c.l.b16 %v779
        %v795 = vpack.c.b16 %v792, %v791
        %v796 = vpack.c.b16 %v794, %v793
        %vm799 = vcmask 261120
        %v801 = vsel %vm799, %v775, 0
        %803 = vmatprep.subr.bf16.mxu0 0
        %804 = vmatpush1.bf16.msra.mxu0 %v795
        %805 = vmatprep.subr.bf16.mxu0 0
        %806 = vmatpush1.bf16.msra.mxu0 %v796
        %807 = vmatprep.subr.bf16.mxu0 0
        %808 = vmatpush1.bf16.msra.mxu0 0
        %809 = vmatprep.subr.bf16.mxu0 0
        %810 = vmatpush1.bf16.msra.mxu0 0
        %811 = vmatprep.subr.bf16.mxu0 0
        %812 = vmatpush1.bf16.msra.mxu0 0
        %813 = vmatprep.subr.bf16.mxu0 0
        %814 = vmatpush1.bf16.msra.mxu0 0
        %815 = vmatprep.subr.bf16.mxu0 0
        %816 = vmatpush1.bf16.msra.mxu0 0
        %817 = vmatprep.subr.bf16.mxu0 0
        %818 = vmatpush1.bf16.msra.mxu0 0
        %819 = vmatprep.subr.bf16.mxu0 0
        %820 = vmatpush1.bf16.msra.mxu0 0
        %821 = vmatprep.subr.bf16.mxu0 0
        %822 = vmatpush1.bf16.msra.mxu0 0
        %823 = vmatprep.subr.bf16.mxu0 0
        %824 = vmatpush1.bf16.msra.mxu0 0
        %825 = vmatprep.subr.bf16.mxu0 0
        %826 = vmatpush1.bf16.msra.mxu0 0
        %827 = vmatprep.subr.bf16.mxu0 0
        %828 = vmatpush1.bf16.msra.mxu0 0
        %829 = vmatprep.subr.bf16.mxu0 0
        %830 = vmatpush1.bf16.msra.mxu0 0
        %831 = vmatprep.subr.bf16.mxu0 0
        %832 = vmatpush1.bf16.msra.mxu0 0
        %833 = vmatprep.subr.bf16.mxu0 0
        %834 = vmatpush1.bf16.msra.mxu0 0
        %835 = vmatprep.mubr.bf16.mxu0 0
        %836 = vmatmul.mubr.bf16.gmra.mrb[0].mxu0 %v801
        %v837 = vpop.f32.mrb[0].mxu0
        %v838 = vadd.f32 %v785, %v837
        %v839 = vpop.f32.mrb[0].mxu0
        %v840 = vpop.f32.mrb[0].mxu0
        %v841 = vpop.f32.mrb[0].mxu0
        %842 = vdwg.mxu0
        %v843 = vpack.c.bf16 %v838, %v838
        %845 = vrot.lane.b32.xlu0 %v843, 96
        %v846 = vpop.permute.xlu0 %845
        %vm847 = vcmask 64512
        %v849 = vsel %vm847, %v843, 0
        %v852 = vsel %vm847, %v846, 0
        %854 = vmatprep.subr.bf16.mxu0 0
        %855 = vmatpush1.bf16.xpose.msra.mxu0 %v852
        %856 = vmatprep.subr.bf16.mxu0 0
        %857 = vmatpush1.bf16.xpose.msra.mxu0 0
        %858 = vmatprep.subr.bf16.mxu0 0
        %859 = vmatpush1.bf16.xpose.msra.mxu0 0
        %860 = vmatprep.subr.bf16.mxu0 0
        %861 = vmatpush1.bf16.xpose.msra.mxu0 0
        %862 = vmatprep.subr.bf16.mxu0 0
        %863 = vmatpush1.bf16.xpose.msra.mxu0 0
        %864 = vmatprep.subr.bf16.mxu0 0
        %865 = vmatpush1.bf16.xpose.msra.mxu0 0
        %866 = vmatprep.subr.bf16.mxu0 0
        %867 = vmatpush1.bf16.xpose.msra.mxu0 0
        %868 = vmatprep.subr.bf16.mxu0 0
        %869 = vmatpush1.bf16.xpose.msra.mxu0 0
        %870 = vmatprep.subr.bf16.mxu0 0
        %871 = vmatpush1.bf16.xpose.msra.mxu0 0
        %872 = vmatprep.subr.bf16.mxu0 0
        %873 = vmatpush1.bf16.xpose.msra.mxu0 0
        %874 = vmatprep.subr.bf16.mxu0 0
        %875 = vmatpush1.bf16.xpose.msra.mxu0 0
        %876 = vmatprep.subr.bf16.mxu0 0
        %877 = vmatpush1.bf16.xpose.msra.mxu0 0
        %878 = vmatprep.subr.bf16.mxu0 0
        %879 = vmatpush1.bf16.xpose.msra.mxu0 0
        %880 = vmatprep.subr.bf16.mxu0 0
        %881 = vmatpush1.bf16.xpose.msra.mxu0 0
        %882 = vmatprep.subr.bf16.mxu0 0
        %883 = vmatpush1.bf16.xpose.msra.mxu0 0
        %884 = vmatprep.subr.bf16.mxu0 0
        %885 = vmatpush1.bf16.xpose.msra.mxu0 0
        %886 = vmatprep.mubr.bf16.mxu0 0
        %887 = vmatmul.mubr.bf16.gmra.mrb[0].mxu0 %v849
        %v888 = vpop.f32.mrb[0].mxu0
        %v889 = vadd.f32 0.0, %v888
        %v890 = vpop.f32.mrb[0].mxu0
        %v891 = vpop.f32.mrb[0].mxu0
        %v892 = vpop.f32.mrb[0].mxu0
        %893 = vdwg.mxu0
        %v894 = vmul.f32 %v889, 0.35355338
        %v896 = vlaneseq
        %v897 = vshrl.u32 %v896, 7
        %v898 = vsub.s32 0, %v897
        %v899 = vrot.slane %v774, %v898
        %v901 = vadd.f32 %v894, %v899
        %v902 = vsel %vm847, %v901, -inf
        %903 = vmax.xlane.f32.xlu0 %v902
        %v904 = vpop.xlane.xlu0 %903
        %v905 = vsub.f32 %v901, %v904
        %v906 = vmul.f32 %v905, 1.442695
        %v907 = vpow.pop %v906
        %v908 = vsel %vm847, %v907, 0.0
        %909 = vadd.xlane.f32.xlu0 %v908
        %v910 = vpop.xlane.xlu0 %909
        %v911 = vrcp.pop %v910
        %v912 = vmul.f32 %v907, %v911
        %v913 = vpack.c.bf16 %v912, %v912
        %914 = vrot.lane.b32.xlu0 %v843, 64
        %v915 = vpop.permute.xlu0 %914
        %v917 = vsel %vm847, %v913, 0
        %vm919 = vcmask 1043456
        %v921 = vsel %vm919, %v915, 0
        %923 = vmatprep.subr.bf16.mxu0 0
        %924 = vmatpush1.bf16.msra.mxu0 %v921
        %925 = vmatprep.subr.bf16.mxu0 0
        %926 = vmatpush1.bf16.msra.mxu0 0
        %927 = vmatprep.subr.bf16.mxu0 0
        %928 = vmatpush1.bf16.msra.mxu0 0
        %929 = vmatprep.subr.bf16.mxu0 0
        %930 = vmatpush1.bf16.msra.mxu0 0
        %931 = vmatprep.subr.bf16.mxu0 0
        %932 = vmatpush1.bf16.msra.mxu0 0
        %933 = vmatprep.subr.bf16.mxu0 0
        %934 = vmatpush1.bf16.msra.mxu0 0
        %935 = vmatprep.subr.bf16.mxu0 0
        %936 = vmatpush1.bf16.msra.mxu0 0
        %937 = vmatprep.subr.bf16.mxu0 0
        %938 = vmatpush1.bf16.msra.mxu0 0
        %939 = vmatprep.subr.bf16.mxu0 0
        %940 = vmatpush1.bf16.msra.mxu0 0
        %941 = vmatprep.subr.bf16.mxu0 0
        %942 = vmatpush1.bf16.msra.mxu0 0
        %943 = vmatprep.subr.bf16.mxu0 0
        %944 = vmatpush1.bf16.msra.mxu0 0
        %945 = vmatprep.subr.bf16.mxu0 0
        %946 = vmatpush1.bf16.msra.mxu0 0
        %947 = vmatprep.subr.bf16.mxu0 0
        %948 = vmatpush1.bf16.msra.mxu0 0
        %949 = vmatprep.subr.bf16.mxu0 0
        %950 = vmatpush1.bf16.msra.mxu0 0
        %951 = vmatprep.subr.bf16.mxu0 0
        %952 = vmatpush1.bf16.msra.mxu0 0
        %953 = vmatprep.subr.bf16.mxu0 0
        %954 = vmatpush1.bf16.msra.mxu0 0
        %955 = vmatprep.mubr.bf16.mxu0 0
        %956 = vmatmul.mubr.bf16.gmra.mrb[0].mxu0 %v917
        %v957 = vpop.f32.mrb[0].mxu0
        %v958 = vadd.f32 0.0, %v957
        %v959 = vpop.f32.mrb[0].mxu0
        %v960 = vpop.f32.mrb[0].mxu0
        %v961 = vpop.f32.mrb[0].mxu0
        %962 = vdwg.mxu0
        %963 = vst.msk [vmem:[#allocation3] sm:$0xff] %vm847, %v958
        %964 = vrot.lane.b32.xlu0 %v843, 120
        %v965 = vpop.permute.xlu0 %964
        %966 = vrot.lane.b32.xlu0 %v843, 88
        %v967 = vpop.permute.xlu0 %966
        %v969 = vsel %vm847, %v965, 0
        %v972 = vsel %vm847, %v967, 0
        %974 = vmatprep.subr.bf16.mxu0 0
        %975 = vmatpush1.bf16.xpose.msra.mxu0 %v972
        %976 = vmatprep.subr.bf16.mxu0 0
        %977 = vmatpush1.bf16.xpose.msra.mxu0 0
        %978 = vmatprep.subr.bf16.mxu0 0
        %979 = vmatpush1.bf16.xpose.msra.mxu0 0
        %980 = vmatprep.subr.bf16.mxu0 0
        %981 = vmatpush1.bf16.xpose.msra.mxu0 0
        %982 = vmatprep.subr.bf16.mxu0 0
        %983 = vmatpush1.bf16.xpose.msra.mxu0 0
        %984 = vmatprep.subr.bf16.mxu0 0
        %985 = vmatpush1.bf16.xpose.msra.mxu0 0
        %986 = vmatprep.subr.bf16.mxu0 0
        %987 = vmatpush1.bf16.xpose.msra.mxu0 0
        %988 = vmatprep.subr.bf16.mxu0 0
        %989 = vmatpush1.bf16.xpose.msra.mxu0 0
        %990 = vmatprep.subr.bf16.mxu0 0
        %991 = vmatpush1.bf16.xpose.msra.mxu0 0
        %992 = vmatprep.subr.bf16.mxu0 0
        %993 = vmatpush1.bf16.xpose.msra.mxu0 0
        %994 = vmatprep.subr.bf16.mxu0 0
        %995 = vmatpush1.bf16.xpose.msra.mxu0 0
        %996 = vmatprep.subr.bf16.mxu0 0
        %997 = vmatpush1.bf16.xpose.msra.mxu0 0
        %998 = vmatprep.subr.bf16.mxu0 0
        %999 = vmatpush1.bf16.xpose.msra.mxu0 0
        %1000 = vmatprep.subr.bf16.mxu0 0
        %1001 = vmatpush1.bf16.xpose.msra.mxu0 0
        %1002 = vmatprep.subr.bf16.mxu0 0
        %1003 = vmatpush1.bf16.xpose.msra.mxu0 0
        %1004 = vmatprep.subr.bf16.mxu0 0
        %1005 = vmatpush1.bf16.xpose.msra.mxu0 0
        %1006 = vmatprep.mubr.bf16.mxu0 0
        %1007 = vmatmul.mubr.bf16.gmra.mrb[0].mxu0 %v969
        %v1008 = vpop.f32.mrb[0].mxu0
        %v1009 = vadd.f32 0.0, %v1008
        %v1010 = vpop.f32.mrb[0].mxu0
        %v1011 = vpop.f32.mrb[0].mxu0
        %v1012 = vpop.f32.mrb[0].mxu0
        %1013 = vdwg.mxu0
        %v1014 = vmul.f32 %v1009, 0.35355338
        %v1015 = vadd.f32 %v1014, %v899
        %v1016 = vsel %vm847, %v1015, -inf
        %1017 = vmax.xlane.f32.xlu0 %v1016
        %v1018 = vpop.xlane.xlu0 %1017
        %v1019 = vsub.f32 %v1015, %v1018
        %v1020 = vmul.f32 %v1019, 1.442695
        %v1021 = vpow.pop %v1020
        %v1022 = vsel %vm847, %v1021, 0.0
        %1023 = vadd.xlane.f32.xlu0 %v1022
        %v1024 = vpop.xlane.xlu0 %1023
        %v1025 = vrcp.pop %v1024
        %v1026 = vmul.f32 %v1021, %v1025
        %v1027 = vpack.c.bf16 %v1026, %v1026
        %1028 = vrot.lane.b32.xlu0 %v843, 56
        %v1029 = vpop.permute.xlu0 %1028
        %v1031 = vsel %vm847, %v1027, 0
        %v1034 = vsel %vm919, %v1029, 0
        %1036 = vmatprep.subr.bf16.mxu0 0
        %1037 = vmatpush1.bf16.msra.mxu0 %v1034
        %1038 = vmatprep.subr.bf16.mxu0 0
        %1039 = vmatpush1.bf16.msra.mxu0 0
        %1040 = vmatprep.subr.bf16.mxu0 0
        %1041 = vmatpush1.bf16.msra.mxu0 0
        %1042 = vmatprep.subr.bf16.mxu0 0
        %1043 = vmatpush1.bf16.msra.mxu0 0
        %1044 = vmatprep.subr.bf16.mxu0 0
        %1045 = vmatpush1.bf16.msra.mxu0 0
        %1046 = vmatprep.subr.bf16.mxu0 0
        %1047 = vmatpush1.bf16.msra.mxu0 0
        %1048 = vmatprep.subr.bf16.mxu0 0
        %1049 = vmatpush1.bf16.msra.mxu0 0
        %1050 = vmatprep.subr.bf16.mxu0 0
        %1051 = vmatpush1.bf16.msra.mxu0 0
        %1052 = vmatprep.subr.bf16.mxu0 0
        %1053 = vmatpush1.bf16.msra.mxu0 0
        %1054 = vmatprep.subr.bf16.mxu0 0
        %1055 = vmatpush1.bf16.msra.mxu0 0
        %1056 = vmatprep.subr.bf16.mxu0 0
        %1057 = vmatpush1.bf16.msra.mxu0 0
        %1058 = vmatprep.subr.bf16.mxu0 0
        %1059 = vmatpush1.bf16.msra.mxu0 0
        %1060 = vmatprep.subr.bf16.mxu0 0
        %1061 = vmatpush1.bf16.msra.mxu0 0
        %1062 = vmatprep.subr.bf16.mxu0 0
        %1063 = vmatpush1.bf16.msra.mxu0 0
        %1064 = vmatprep.subr.bf16.mxu0 0
        %1065 = vmatpush1.bf16.msra.mxu0 0
        %1066 = vmatprep.subr.bf16.mxu0 0
        %1067 = vmatpush1.bf16.msra.mxu0 0
        %1068 = vmatprep.mubr.bf16.mxu0 0
        %1069 = vmatmul.mubr.bf16.gmra.mrb[0].mxu0 %v1031
        %v1070 = vpop.f32.mrb[0].mxu0
        %v1071 = vadd.f32 0.0, %v1070
        %v1072 = vpop.f32.mrb[0].mxu0
        %v1073 = vpop.f32.mrb[0].mxu0
        %v1074 = vpop.f32.mrb[0].mxu0
        %1075 = vdwg.mxu0
        %1077 = vrot.lane.b32.xlu0 %v1071, 8
        %v1078 = vpop.permute.xlu0 %1077
        %vm1080 = vcmask 130112
        %1081 = vst.msk [vmem:[#allocation3] sm:$0xff] %vm1080, %v1078
        %1082 = vrot.lane.b32.xlu0 %v843, 112
        %v1083 = vpop.permute.xlu0 %1082
        %1084 = vrot.lane.b32.xlu0 %v843, 80
        %v1085 = vpop.permute.xlu0 %1084
        %v1087 = vsel %vm847, %v1083, 0
        %v1090 = vsel %vm847, %v1085, 0
        %1092 = vmatprep.subr.bf16.mxu0 0
        %1093 = vmatpush1.bf16.xpose.msra.mxu0 %v1090
        %1094 = vmatprep.subr.bf16.mxu0 0
        %1095 = vmatpush1.bf16.xpose.msra.mxu0 0
        %1096 = vmatprep.subr.bf16.mxu0 0
        %1097 = vmatpush1.bf16.xpose.msra.mxu0 0
        %1098 = vmatprep.subr.bf16.mxu0 0
        %1099 = vmatpush1.bf16.xpose.msra.mxu0 0
        %1100 = vmatprep.subr.bf16.mxu0 0
        %1101 = vmatpush1.bf16.xpose.msra.mxu0 0
        %1102 = vmatprep.subr.bf16.mxu0 0
        %1103 = vmatpush1.bf16.xpose.msra.mxu0 0
        %1104 = vmatprep.subr.bf16.mxu0 0
        %1105 = vmatpush1.bf16.xpose.msra.mxu0 0
        %1106 = vmatprep.subr.bf16.mxu0 0
        %1107 = vmatpush1.bf16.xpose.msra.mxu0 0
        %1108 = vmatprep.subr.bf16.mxu0 0
        %1109 = vmatpush1.bf16.xpose.msra.mxu0 0
        %1110 = vmatprep.subr.bf16.mxu0 0
        %1111 = vmatpush1.bf16.xpose.msra.mxu0 0
        %1112 = vmatprep.subr.bf16.mxu0 0
        %1113 = vmatpush1.bf16.xpose.msra.mxu0 0
        %1114 = vmatprep.subr.bf16.mxu0 0
        %1115 = vmatpush1.bf16.xpose.msra.mxu0 0
        %1116 = vmatprep.subr.bf16.mxu0 0
        %1117 = vmatpush1.bf16.xpose.msra.mxu0 0
        %1118 = vmatprep.subr.bf16.mxu0 0
        %1119 = vmatpush1.bf16.xpose.msra.mxu0 0
        %1120 = vmatprep.subr.bf16.mxu0 0
        %1121 = vmatpush1.bf16.xpose.msra.mxu0 0
        %1122 = vmatprep.subr.bf16.mxu0 0
        %1123 = vmatpush1.bf16.xpose.msra.mxu0 0
        %1124 = vmatprep.mubr.bf16.mxu0 0
        %1125 = vmatmul.mubr.bf16.gmra.mrb[0].mxu0 %v1087
        %v1126 = vpop.f32.mrb[0].mxu0
        %v1127 = vadd.f32 0.0, %v1126
        %v1128 = vpop.f32.mrb[0].mxu0
        %v1129 = vpop.f32.mrb[0].mxu0
        %v1130 = vpop.f32.mrb[0].mxu0
        %1131 = vdwg.mxu0
        %v1132 = vmul.f32 %v1127, 0.35355338
        %v1133 = vadd.f32 %v1132, %v899
        %v1134 = vsel %vm847, %v1133, -inf
        %1135 = vmax.xlane.f32.xlu0 %v1134
        %v1136 = vpop.xlane.xlu0 %1135
        %v1137 = vsub.f32 %v1133, %v1136
        %v1138 = vmul.f32 %v1137, 1.442695
        %v1139 = vpow.pop %v1138
        %v1140 = vsel %vm847, %v1139, 0.0
        %1141 = vadd.xlane.f32.xlu0 %v1140
        %v1142 = vpop.xlane.xlu0 %1141
        %v1143 = vrcp.pop %v1142
        %v1144 = vmul.f32 %v1139, %v1143
        %v1145 = vpack.c.bf16 %v1144, %v1144
        %1146 = vrot.lane.b32.xlu0 %v843, 48
        %v1147 = vpop.permute.xlu0 %1146
        %v1149 = vsel %vm847, %v1145, 0
        %v1152 = vsel %vm919, %v1147, 0
        %1154 = vmatprep.subr.bf16.mxu0 0
        %1155 = vmatpush1.bf16.msra.mxu0 %v1152
        %1156 = vmatprep.subr.bf16.mxu0 0
        %1157 = vmatpush1.bf16.msra.mxu0 0
        %1158 = vmatprep.subr.bf16.mxu0 0
        %1159 = vmatpush1.bf16.msra.mxu0 0
        %1160 = vmatprep.subr.bf16.mxu0 0
        %1161 = vmatpush1.bf16.msra.mxu0 0
        %1162 = vmatprep.subr.bf16.mxu0 0
        %1163 = vmatpush1.bf16.msra.mxu0 0
        %1164 = vmatprep.subr.bf16.mxu0 0
        %1165 = vmatpush1.bf16.msra.mxu0 0
        %1166 = vmatprep.subr.bf16.mxu0 0
        %1167 = vmatpush1.bf16.msra.mxu0 0
        %1168 = vmatprep.subr.bf16.mxu0 0
        %1169 = vmatpush1.bf16.msra.mxu0 0
        %1170 = vmatprep.subr.bf16.mxu0 0
        %1171 = vmatpush1.bf16.msra.mxu0 0
        %1172 = vmatprep.subr.bf16.mxu0 0
        %1173 = vmatpush1.bf16.msra.mxu0 0
        %1174 = vmatprep.subr.bf16.mxu0 0
        %1175 = vmatpush1.bf16.msra.mxu0 0
        %1176 = vmatprep.subr.bf16.mxu0 0
        %1177 = vmatpush1.bf16.msra.mxu0 0
        %1178 = vmatprep.subr.bf16.mxu0 0
        %1179 = vmatpush1.bf16.msra.mxu0 0
        %1180 = vmatprep.subr.bf16.mxu0 0
        %1181 = vmatpush1.bf16.msra.mxu0 0
        %1182 = vmatprep.subr.bf16.mxu0 0
        %1183 = vmatpush1.bf16.msra.mxu0 0
        %1184 = vmatprep.subr.bf16.mxu0 0
        %1185 = vmatpush1.bf16.msra.mxu0 0
        %1186 = vmatprep.mubr.bf16.mxu0 0
        %1187 = vmatmul.mubr.bf16.gmra.mrb[0].mxu0 %v1149
        %v1188 = vpop.f32.mrb[0].mxu0
        %v1189 = vadd.f32 0.0, %v1188
        %v1190 = vpop.f32.mrb[0].mxu0
        %v1191 = vpop.f32.mrb[0].mxu0
        %v1192 = vpop.f32.mrb[0].mxu0
        %1193 = vdwg.mxu0
        %1195 = vrot.lane.b32.xlu0 %v1189, 16
        %v1196 = vpop.permute.xlu0 %1195
        %vm1198 = vcmask 195712
        %1199 = vst.msk [vmem:[#allocation3] sm:$0xff] %vm1198, %v1196
        %1200 = vrot.lane.b32.xlu0 %v843, 104
        %v1201 = vpop.permute.xlu0 %1200
        %1202 = vrot.lane.b32.xlu0 %v843, 72
        %v1203 = vpop.permute.xlu0 %1202
        %v1205 = vsel %vm847, %v1201, 0
        %v1208 = vsel %vm847, %v1203, 0
        %1210 = vmatprep.subr.bf16.mxu0 0
        %1211 = vmatpush1.bf16.xpose.msra.mxu0 %v1208
        %1212 = vmatprep.subr.bf16.mxu0 0
        %1213 = vmatpush1.bf16.xpose.msra.mxu0 0
        %1214 = vmatprep.subr.bf16.mxu0 0
        %1215 = vmatpush1.bf16.xpose.msra.mxu0 0
        %1216 = vmatprep.subr.bf16.mxu0 0
        %1217 = vmatpush1.bf16.xpose.msra.mxu0 0
        %1218 = vmatprep.subr.bf16.mxu0 0
        %1219 = vmatpush1.bf16.xpose.msra.mxu0 0
        %1220 = vmatprep.subr.bf16.mxu0 0
        %1221 = vmatpush1.bf16.xpose.msra.mxu0 0
        %1222 = vmatprep.subr.bf16.mxu0 0
        %1223 = vmatpush1.bf16.xpose.msra.mxu0 0
        %1224 = vmatprep.subr.bf16.mxu0 0
        %1225 = vmatpush1.bf16.xpose.msra.mxu0 0
        %1226 = vmatprep.subr.bf16.mxu0 0
        %1227 = vmatpush1.bf16.xpose.msra.mxu0 0
        %1228 = vmatprep.subr.bf16.mxu0 0
        %1229 = vmatpush1.bf16.xpose.msra.mxu0 0
        %1230 = vmatprep.subr.bf16.mxu0 0
        %1231 = vmatpush1.bf16.xpose.msra.mxu0 0
        %1232 = vmatprep.subr.bf16.mxu0 0
        %1233 = vmatpush1.bf16.xpose.msra.mxu0 0
        %1234 = vmatprep.subr.bf16.mxu0 0
        %1235 = vmatpush1.bf16.xpose.msra.mxu0 0
        %1236 = vmatprep.subr.bf16.mxu0 0
        %1237 = vmatpush1.bf16.xpose.msra.mxu0 0
        %1238 = vmatprep.subr.bf16.mxu0 0
        %1239 = vmatpush1.bf16.xpose.msra.mxu0 0
        %1240 = vmatprep.subr.bf16.mxu0 0
        %1241 = vmatpush1.bf16.xpose.msra.mxu0 0
        %1242 = vmatprep.mubr.bf16.mxu0 0
        %1243 = vmatmul.mubr.bf16.gmra.mrb[0].mxu0 %v1205
        %v1244 = vpop.f32.mrb[0].mxu0
        %v1245 = vadd.f32 0.0, %v1244
        %v1246 = vpop.f32.mrb[0].mxu0
        %v1247 = vpop.f32.mrb[0].mxu0
        %v1248 = vpop.f32.mrb[0].mxu0
        %1249 = vdwg.mxu0
        %v1250 = vmul.f32 %v1245, 0.35355338
        %v1251 = vadd.f32 %v1250, %v899
        %v1252 = vsel %vm847, %v1251, -inf
        %1253 = vmax.xlane.f32.xlu0 %v1252
        %v1254 = vpop.xlane.xlu0 %1253
        %v1255 = vsub.f32 %v1251, %v1254
        %v1256 = vmul.f32 %v1255, 1.442695
        %v1257 = vpow.pop %v1256
        %v1258 = vsel %vm847, %v1257, 0.0
        %1259 = vadd.xlane.f32.xlu0 %v1258
        %v1260 = vpop.xlane.xlu0 %1259
        %v1261 = vrcp.pop %v1260
        %v1262 = vmul.f32 %v1257, %v1261
        %v1263 = vpack.c.bf16 %v1262, %v1262
        %1264 = vrot.lane.b32.xlu0 %v843, 40
        %v1265 = vpop.permute.xlu0 %1264
        %v1267 = vsel %vm847, %v1263, 0
        %v1270 = vsel %vm919, %v1265, 0
        %1272 = vmatprep.subr.bf16.mxu0 0
        %1273 = vmatpush1.bf16.msra.mxu0 %v1270
        %1274 = vmatprep.subr.bf16.mxu0 0
        %1275 = vmatpush1.bf16.msra.mxu0 0
        %1276 = vmatprep.subr.bf16.mxu0 0
        %1277 = vmatpush1.bf16.msra.mxu0 0
        %1278 = vmatprep.subr.bf16.mxu0 0
        %1279 = vmatpush1.bf16.msra.mxu0 0
        %1280 = vmatprep.subr.bf16.mxu0 0
        %1281 = vmatpush1.bf16.msra.mxu0 0
        %1282 = vmatprep.subr.bf16.mxu0 0
        %1283 = vmatpush1.bf16.msra.mxu0 0
        %1284 = vmatprep.subr.bf16.mxu0 0
        %1285 = vmatpush1.bf16.msra.mxu0 0
        %1286 = vmatprep.subr.bf16.mxu0 0
        %1287 = vmatpush1.bf16.msra.mxu0 0
        %1288 = vmatprep.subr.bf16.mxu0 0
        %1289 = vmatpush1.bf16.msra.mxu0 0
        %1290 = vmatprep.subr.bf16.mxu0 0
        %1291 = vmatpush1.bf16.msra.mxu0 0
        %1292 = vmatprep.subr.bf16.mxu0 0
        %1293 = vmatpush1.bf16.msra.mxu0 0
        %1294 = vmatprep.subr.bf16.mxu0 0
        %1295 = vmatpush1.bf16.msra.mxu0 0
        %1296 = vmatprep.subr.bf16.mxu0 0
        %1297 = vmatpush1.bf16.msra.mxu0 0
        %1298 = vmatprep.subr.bf16.mxu0 0
        %1299 = vmatpush1.bf16.msra.mxu0 0
        %1300 = vmatprep.subr.bf16.mxu0 0
        %1301 = vmatpush1.bf16.msra.mxu0 0
        %1302 = vmatprep.subr.bf16.mxu0 0
        %1303 = vmatpush1.bf16.msra.mxu0 0
        %1304 = vmatprep.mubr.bf16.mxu0 0
        %1305 = vmatmul.mubr.bf16.gmra.mrb[0].mxu0 %v1267
        %v1306 = vpop.f32.mrb[0].mxu0
        %v1307 = vadd.f32 0.0, %v1306
        %v1308 = vpop.f32.mrb[0].mxu0
        %v1309 = vpop.f32.mrb[0].mxu0
        %v1310 = vpop.f32.mrb[0].mxu0
        %1311 = vdwg.mxu0
        %1313 = vrot.lane.b32.xlu0 %v1307, 24
        %v1314 = vpop.permute.xlu0 %1313
        %vm1316 = vcmask 261312
        %1317 = vst.msk [vmem:[#allocation3] sm:$0xff] %vm1316, %v1314
        %v1318 = vld [vmem:[#allocation3] sm:$0xff]
        %v1319 = vpack.c.bf16 %v1318, %v1318
        %v1320 = vld [vmem:[%s703] sm:$0xf]
        %v1321 = vld [vmem:[%s703 + $0x4] sm:$0xf]
        %v1322 = vld [vmem:[%s703 + $0x8] sm:$0xf]
        %v1323 = vld [vmem:[%s703 + $0xc] sm:$0xf]
        %v1324 = vld [vmem:[%s706] sm:$0x1]
        %v1326 = vlaneseq
        %v1327 = vshrl.u32 %v1326, 7
        %v1328 = vsub.s32 0, %v1327
        %v1329 = vrot.slane %v1324, %v1328
        %v1335 = vunpack.c.l.b16 %v1320
        %v1336 = vunpack.c.l.b16 %v1321
        %v1337 = vunpack.c.l.b16 %v1322
        %v1338 = vunpack.c.l.b16 %v1323
        %v1339 = vpack.c.b16 %v1336, %v1335
        %v1340 = vpack.c.b16 %v1338, %v1337
        %v1344 = vsel %vm799, %v1319, 0
        %1346 = vmatprep.subr.bf16.mxu0 0
        %1347 = vmatpush1.bf16.msra.mxu0 %v1339
        %1348 = vmatprep.subr.bf16.mxu0 0
        %1349 = vmatpush1.bf16.msra.mxu0 %v1340
        %1350 = vmatprep.subr.bf16.mxu0 0
        %1351 = vmatpush1.bf16.msra.mxu0 0
        %1352 = vmatprep.subr.bf16.mxu0 0
        %1353 = vmatpush1.bf16.msra.mxu0 0
        %1354 = vmatprep.subr.bf16.mxu0 0
        %1355 = vmatpush1.bf16.msra.mxu0 0
        %1356 = vmatprep.subr.bf16.mxu0 0
        %1357 = vmatpush1.bf16.msra.mxu0 0
        %1358 = vmatprep.subr.bf16.mxu0 0
        %1359 = vmatpush1.bf16.msra.mxu0 0
        %1360 = vmatprep.subr.bf16.mxu0 0
        %1361 = vmatpush1.bf16.msra.mxu0 0
        %1362 = vmatprep.subr.bf16.mxu0 0
        %1363 = vmatpush1.bf16.msra.mxu0 0
        %1364 = vmatprep.subr.bf16.mxu0 0
        %1365 = vmatpush1.bf16.msra.mxu0 0
        %1366 = vmatprep.subr.bf16.mxu0 0
        %1367 = vmatpush1.bf16.msra.mxu0 0
        %1368 = vmatprep.subr.bf16.mxu0 0
        %1369 = vmatpush1.bf16.msra.mxu0 0
        %1370 = vmatprep.subr.bf16.mxu0 0
        %1371 = vmatpush1.bf16.msra.mxu0 0
        %1372 = vmatprep.subr.bf16.mxu0 0
        %1373 = vmatpush1.bf16.msra.mxu0 0
        %1374 = vmatprep.subr.bf16.mxu0 0
        %1375 = vmatpush1.bf16.msra.mxu0 0
        %1376 = vmatprep.subr.bf16.mxu0 0
        %1377 = vmatpush1.bf16.msra.mxu0 0
        %1378 = vmatprep.mubr.bf16.mxu0 0
        %1379 = vmatmul.mubr.bf16.gmra.mrb[0].mxu0 %v1344
        %v1380 = vpop.f32.mrb[0].mxu0
        %v1381 = vadd.f32 %v1329, %v1380
        %v1382 = vpop.f32.mrb[0].mxu0
        %v1383 = vpop.f32.mrb[0].mxu0
        %v1384 = vpop.f32.mrb[0].mxu0
        %1385 = vdwg.mxu0
        %v1386 = vadd.f32 %v1381, %v773
        %v1387 = vld [vmem:[%s709] sm:$0x1]
        %v1388 = vld [vmem:[%s712] sm:$0x1]
        %v1389 = vsel %vm799, %v1386, 0.0
        %1390 = vadd.xlane.f32.xlu0 %v1389
        %v1391 = vpop.xlane.xlu0 %1390
        %v1392 = vrcp.pop 32.0
        %v1393 = vmul.f32 %v1391, %v1392
        %v1394 = vsub.f32 %v1386, %v1393
        %v1395 = vmul.f32 %v1394, %v1394
        %v1396 = vsel %vm799, %v1395, 0.0
        %1397 = vadd.xlane.f32.xlu0 %v1396
        %v1398 = vpop.xlane.xlu0 %1397
        %v1399 = vmul.f32 %v1398, %v1392
        %v1400 = vadd.f32 %v1399, 1e-12
        %v1401 = vrsqrt.pop %v1400
        %v1402 = vmul.f32 %v1394, %v1401
        %v1404 = vlaneseq
        %v1405 = vshrl.u32 %v1404, 7
        %v1406 = vsub.s32 0, %v1405
        %v1407 = vrot.slane %v1387, %v1406
        %v1409 = vmul.f32 %v1402, %v1407
        %v1411 = vlaneseq
        %v1412 = vshrl.u32 %v1411, 7
        %v1413 = vsub.s32 0, %v1412
        %v1414 = vrot.slane %v1388, %v1413
        %v1416 = vadd.f32 %v1409, %v1414
        %v1417 = vpack.c.bf16 %v1416, %v1416
        %v1418 = vld [vmem:[%s717] sm:$0xf]
        %v1419 = vld [vmem:[%s717 + $0x4] sm:$0xf]
        %v1420 = vld [vmem:[%s717 + $0x8] sm:$0xf]
        %v1421 = vld [vmem:[%s717 + $0xc] sm:$0xf]
        %v1422 = vld [vmem:[%s720] sm:$0x1]
        %v1424 = vlaneseq
        %v1425 = vshrl.u32 %v1424, 7
        %v1426 = vsub.s32 0, %v1425
        %v1427 = vrot.slane %v1422, %v1426
        %v1433 = vunpack.c.l.b16 %v1418
        %v1434 = vunpack.c.l.b16 %v1419
        %v1435 = vunpack.c.l.b16 %v1420
        %v1436 = vunpack.c.l.b16 %v1421
        %v1437 = vpack.c.b16 %v1434, %v1433
        %v1438 = vpack.c.b16 %v1436, %v1435
        %v1442 = vsel %vm799, %v1417, 0
        %1444 = vmatprep.subr.bf16.mxu0 0
        %1445 = vmatpush1.bf16.msra.mxu0 %v1437
        %1446 = vmatprep.subr.bf16.mxu0 0
        %1447 = vmatpush1.bf16.msra.mxu0 %v1438
        %1448 = vmatprep.subr.bf16.mxu0 0
        %1449 = vmatpush1.bf16.msra.mxu0 0
        %1450 = vmatprep.subr.bf16.mxu0 0
        %1451 = vmatpush1.bf16.msra.mxu0 0
        %1452 = vmatprep.subr.bf16.mxu0 0
        %1453 = vmatpush1.bf16.msra.mxu0 0
        %1454 = vmatprep.subr.bf16.mxu0 0
        %1455 = vmatpush1.bf16.msra.mxu0 0
        %1456 = vmatprep.subr.bf16.mxu0 0
        %1457 = vmatpush1.bf16.msra.mxu0 0
        %1458 = vmatprep.subr.bf16.mxu0 0
        %1459 = vmatpush1.bf16.msra.mxu0 0
        %1460 = vmatprep.subr.bf16.mxu0 0
        %1461 = vmatpush1.bf16.msra.mxu0 0
        %1462 = vmatprep.subr.bf16.mxu0 0
        %1463 = vmatpush1.bf16.msra.mxu0 0
        %1464 = vmatprep.subr.bf16.mxu0 0
        %1465 = vmatpush1.bf16.msra.mxu0 0
        %1466 = vmatprep.subr.bf16.mxu0 0
        %1467 = vmatpush1.bf16.msra.mxu0 0
        %1468 = vmatprep.subr.bf16.mxu0 0
        %1469 = vmatpush1.bf16.msra.mxu0 0
        %1470 = vmatprep.subr.bf16.mxu0 0
        %1471 = vmatpush1.bf16.msra.mxu0 0
        %1472 = vmatprep.subr.bf16.mxu0 0
        %1473 = vmatpush1.bf16.msra.mxu0 0
        %1474 = vmatprep.subr.bf16.mxu0 0
        %1475 = vmatpush1.bf16.msra.mxu0 0
        %1476 = vmatprep.mubr.bf16.mxu0 0
        %1477 = vmatmul.mubr.bf16.gmra.mrb[0].mxu0 %v1442
        %v1478 = vpop.f32.mrb[0].mxu0
        %v1479 = vadd.f32 %v1427, %v1478
        %v1480 = vpop.f32.mrb[0].mxu0
        %v1481 = vpop.f32.mrb[0].mxu0
        %v1482 = vpop.f32.mrb[0].mxu0
        %1483 = vdwg.mxu0
        %v1484 = vmul.f32 %v1479, %v1479
        %v1485 = vmul.f32 %v1479, %v1484
        %v1486 = vmul.f32 %v1485, 0.044715
        %v1487 = vadd.f32 %v1479, %v1486
        %v1488 = vmul.f32 %v1487, 0.7978846
        %v1489 = vtanh.pop %v1488
        %v1490 = vadd.f32 %v1489, 1.0
        %v1491 = vmul.f32 %v1490, 0.5
        %v1492 = vmul.f32 %v1479, %v1491
        %v1493 = vpack.c.bf16 %v1492, %v1492
        %v1494 = vld [vmem:[%s725] sm:$0xf]
        %v1495 = vld [vmem:[%s725 + $0x4] sm:$0xf]
        %v1496 = vld [vmem:[%s725 + $0x8] sm:$0xf]
        %v1497 = vld [vmem:[%s725 + $0xc] sm:$0xf]
        %v1498 = vld [vmem:[%s725 + $0x10] sm:$0xf]
        %v1499 = vld [vmem:[%s725 + $0x14] sm:$0xf]
        %v1500 = vld [vmem:[%s725 + $0x18] sm:$0xf]
        %v1501 = vld [vmem:[%s725 + $0x1c] sm:$0xf]
        %v1502 = vld [vmem:[%s728] sm:$0x1]
        %v1504 = vlaneseq
        %v1505 = vshrl.u32 %v1504, 7
        %v1506 = vsub.s32 0, %v1505
        %v1507 = vrot.slane %v1502, %v1506
        %v1517 = vunpack.c.l.b16 %v1494
        %v1518 = vunpack.c.l.b16 %v1495
        %v1519 = vunpack.c.l.b16 %v1496
        %v1520 = vunpack.c.l.b16 %v1497
        %v1521 = vunpack.c.l.b16 %v1498
        %v1522 = vunpack.c.l.b16 %v1499
        %v1523 = vunpack.c.l.b16 %v1500
        %v1524 = vunpack.c.l.b16 %v1501
        %v1525 = vpack.c.b16 %v1518, %v1517
        %v1526 = vpack.c.b16 %v1520, %v1519
        %v1527 = vpack.c.b16 %v1522, %v1521
        %v1528 = vpack.c.b16 %v1524, %v1523
        %vm1533 = vcmask 523264
        %v1535 = vsel %vm1533, %v1493, 0
        %1537 = vmatprep.subr.bf16.mxu0 0
        %1538 = vmatpush1.bf16.msra.mxu0 %v1525
        %1539 = vmatprep.subr.bf16.mxu0 0
        %1540 = vmatpush1.bf16.msra.mxu0 %v1526
        %1541 = vmatprep.subr.bf16.mxu0 0
        %1542 = vmatpush1.bf16.msra.mxu0 %v1527
        %1543 = vmatprep.subr.bf16.mxu0 0
        %1544 = vmatpush1.bf16.msra.mxu0 %v1528
        %1545 = vmatprep.subr.bf16.mxu0 0
        %1546 = vmatpush1.bf16.msra.mxu0 0
        %1547 = vmatprep.subr.bf16.mxu0 0
        %1548 = vmatpush1.bf16.msra.mxu0 0
        %1549 = vmatprep.subr.bf16.mxu0 0
        %1550 = vmatpush1.bf16.msra.mxu0 0
        %1551 = vmatprep.subr.bf16.mxu0 0
        %1552 = vmatpush1.bf16.msra.mxu0 0
        %1553 = vmatprep.subr.bf16.mxu0 0
        %1554 = vmatpush1.bf16.msra.mxu0 0
        %1555 = vmatprep.subr.bf16.mxu0 0
        %1556 = vmatpush1.bf16.msra.mxu0 0
        %1557 = vmatprep.subr.bf16.mxu0 0
        %1558 = vmatpush1.bf16.msra.mxu0 0
        %1559 = vmatprep.subr.bf16.mxu0 0
        %1560 = vmatpush1.bf16.msra.mxu0 0
        %1561 = vmatprep.subr.bf16.mxu0 0
        %1562 = vmatpush1.bf16.msra.mxu0 0
        %1563 = vmatprep.subr.bf16.mxu0 0
        %1564 = vmatpush1.bf16.msra.mxu0 0
        %1565 = vmatprep.subr.bf16.mxu0 0
        %1566 = vmatpush1.bf16.msra.mxu0 0
        %1567 = vmatprep.subr.bf16.mxu0 0
        %1568 = vmatpush1.bf16.msra.mxu0 0
        %1569 = vmatprep.mubr.bf16.mxu0 0
        %1570 = vmatmul.mubr.bf16.gmra.mrb[0].mxu0 %v1535
        %v1571 = vpop.f32.mrb[0].mxu0
        %v1572 = vadd.f32 %v1507, %v1571
        %v1573 = vpop.f32.mrb[0].mxu0
        %v1574 = vpop.f32.mrb[0].mxu0
        %v1575 = vpop.f32.mrb[0].mxu0
        %1576 = vdwg.mxu0
        %v1577 = vadd.f32 %v1572, %v1416
        %v1578 = vld [vmem:[%s731] sm:$0x1]
        %v1579 = vld [vmem:[%s734] sm:$0x1]
        %v1580 = vsel %vm799, %v1577, 0.0
        %1581 = vadd.xlane.f32.xlu0 %v1580
        %v1582 = vpop.xlane.xlu0 %1581
        %v1583 = vmul.f32 %v1582, %v1392
        %v1584 = vsub.f32 %v1577, %v1583
        %v1585 = vmul.f32 %v1584, %v1584
        %v1586 = vsel %vm799, %v1585, 0.0
        %1587 = vadd.xlane.f32.xlu0 %v1586
        %v1588 = vpop.xlane.xlu0 %1587
        %v1589 = vmul.f32 %v1588, %v1392
        %v1590 = vadd.f32 %v1589, 1e-12
        %v1591 = vrsqrt.pop %v1590
        %v1592 = vmul.f32 %v1584, %v1591
        %v1594 = vlaneseq
        %v1595 = vshrl.u32 %v1594, 7
        %v1596 = vsub.s32 0, %v1595
        %v1597 = vrot.slane %v1578, %v1596
        %v1599 = vmul.f32 %v1592, %v1597
        %v1601 = vlaneseq
        %v1602 = vshrl.u32 %v1601, 7
        %v1603 = vsub.s32 0, %v1602
        %v1604 = vrot.slane %v1579, %v1603
        %v1606 = vadd.f32 %v1599, %v1604
        %1607 = vst.msk [vmem:[#allocation2] sm:$0xff] %vm799, %v1606
        %p1608 = scmp.eq.s32.totalorder %s35, 1
        // Predicated region
        $region89: #{text_feature_extract.1} parent=83 // pred_check
          %p1609 = pneg %p1608
        $region90: #{text_feature_extract.1} parent=83 // pred_check_branch
          %1611 = sbr.rel (%p1609) target = $region92
        $region91: #{text_feature_extract.1} parent=83 // pred_region
          %1612 = vst.msk [vmem:[%s683] sm:$0xff] %vm799, %v1606
        $region92: #{text_feature_extract.1} parent=83 // pred_fallthru
          _
        %s1613 = sand.u32 %s456, 1
        %s1614 = scalar_lea.sflag [#allocation5], %s1613
        %s1615 = sand.u32 %s456, 1
        %s1616 = smul.addr %s1615, 8
        %s1617 = scalar_lea.vmem [#allocation4], %s1616
        // Predicated region
        $region93: #{text_feature_extract.1} parent=83 // pred_check
          %p1618 = pneg %p466
        $region94: #{text_feature_extract.1} parent=83 // pred_check_branch
          %1620 = sbr.rel (%p1618) target = $region96
        $region95: #{text_feature_extract.1} parent=83 // pred_region
          %s1622 = ssub.s32 128, 128
          %1623 = vsyncadd %s1614, %s1622
          %s1624 = smul.addr %s34, 128
          %s1625 = scalar_lea.hbm %s16, %s1624
          %s1627 = sshll.u32 %s1617, 4
          %s1628 = int_to_ptr.vmem [resolvable:$true] %s1627
          %1630 = dma.vmem_to_hbm [thread:$0]  %s1628, 128, %s1625, %s1614
        $region96: #{text_feature_extract.1} parent=83 // pred_fallthru
          _
      $region84: #{text_feature_extract.1} parent=5 // pred_fallthru
        _
      %p1631 = scmp.le.s32.totalorder 2, %s25
      // Predicated region
      $region97: #{text_feature_extract.1} parent=5 // pred_check
        %p1632 = pneg %p1631
      $region98: #{text_feature_extract.1} parent=5 // pred_check_branch
        %1634 = sbr.rel (%p1632) target = $region100
      $region99: #{text_feature_extract.1} parent=5 // pred_region
        %s1635 = ssub.s32 %s25, 2
        // Predicated region
        $region101: #{text_feature_extract.1} parent=99 // pred_check
          %p1636 = pneg %p472
        $region102: #{text_feature_extract.1} parent=99 // pred_check_branch
          %1638 = sbr.rel (%p1636) target = $region104
        $region103: #{text_feature_extract.1} parent=99 // pred_region
          %s1639 = sand.u32 %s457, 1
          %s1640 = scalar_lea.sflag [#allocation5], %s1639
          %s1641 = sand.u32 %s457, 1
          %s1642 = smul.addr %s1641, 8
          %s1643 = scalar_lea.vmem [#allocation4], %s1642
          %1644 = dma.done %s1640, 128
        $region104: #{text_feature_extract.1} parent=99 // pred_fallthru
          _
      $region100: #{text_feature_extract.1} parent=5 // pred_fallthru
        _
    $region6: #{text_feature_extract.1} parent=1 // loop_footer
      %s29 = sadd.s32 1, %s25
    $region7: #{text_feature_extract.1} parent=1 // loop_footer_branch
      %24 = sbr.rel target = $region3
    $region8: #{text_feature_extract.1} parent=1 // loop_exit
      _
    %1645 = vsyncpa [#allocation5], 1
    %s1646 = scalar_lea.sflag [#allocation5], 1
    %1647 = vsyncpa %s1646, 1

</llo_original>
